<compile_context>
chip_gen: v7x
topology: tpu7x:2x2x1
jax: 0.10.0
libtpu: 0.0.40
codegen_flags: <defaults>
</compile_context>

<pallas_src>
import numpy as np
import jax
import jax.numpy as jnp
from jax.experimental import pallas as pl
from jax.experimental.pallas import tpu as pltpu

# ----- module hyper-parameters (QIDDM_PL_old(..., hidden_features=4, spectrum_layer=2, N=2)) -----
HIDDEN = 4              # hidden_features == number of qubits
L = 2                   # spectrum_layer
N_ITER = 2              # N
DIM = 2 ** HIDDEN       # statevector dimension
DIM2 = 2 * DIM          # packed [re | im] width


def _round_up(v, m):
    return ((v + m - 1) // m) * m


def _cdiv(a, b):
    return -(-a // b)


# ------------------------------- Pallas kernel -------------------------------
def qiddm_kernel(x_ref, menc_ref, mloop_ref, w_ref, mout_ref, bout_ref, o_ref):
    # Encoding phases, sign-duplicated:  phi2 = [ +phi | -phi ]
    #   -> cos(phi2) = [ c | c ],  sin(phi2) = [ s | -s ]   (full-width, no concats)
    # PCA projection, mean-centering and the encoding bias are all folded into
    # menc_ref (bias rides in the 1.0-column of x / extra row of M_enc).
    phi2 = jnp.dot(x_ref[...], menc_ref[...], preferred_element_type=jnp.float32)

    sq = None
    for n in range(N_ITER):
        cc = jnp.cos(phi2)                                        # (TB, 2*DIM)
        sn = jnp.sin(phi2)                                        # (TB, 2*DIM)

        # spectrum layer l = 0 on |0...0>:  psi = e^{i phi_0} * row_0(U^T)
        # (outer product with rows 0 / DIM of the packed unitary, no matmul)
        w0 = w_ref[2 * (n * L)]                                   # (2*DIM, 2*DIM)
        c0 = cc[:, 0:1]
        s0 = sn[:, 0:1]
        psi = c0 * w0[0:1, :] + s0 * w0[DIM:DIM + 1, :]           # (TB, 2*DIM) = [re | im]

        # spectrum layers l = 1..L-1: RZ diagonal phase + complex unitary.
        # The [re|im] half-swap of the phase rotation is folded into the
        # host-precomputed row-swapped unitary copy (everything stays full-width):
        #     psi' = (cc*psi) @ W  +  (sn*psi) @ W_swap
        for l in range(1, L):
            idx = 2 * (n * L + l)
            psi = (jnp.dot(cc * psi, w_ref[idx],
                           preferred_element_type=jnp.float32)
                   + jnp.dot(sn * psi, w_ref[idx + 1],
                             preferred_element_type=jnp.float32))

        sq = psi * psi                                            # [re^2 | im^2]

        if n + 1 < N_ITER:
            # <Z_j> re-encoded as next phases; the duplicated-row M_loop sums the
            # squared halves, sign-duplicated columns rebuild [ +phi | -phi ].
            phi2 = jnp.dot(sq, mloop_ref[...], preferred_element_type=jnp.float32)

    # <Z_j> folded into linear_up:  out = |psi|^2 @ (zT @ W_up^T) + b_up
    out = jnp.dot(sq, mout_ref[...], preferred_element_type=jnp.float32) + bout_ref[...]
    o_ref[...] = out.astype(o_ref.dtype)


# ----------------- parameter setup (glue, plain numpy, float64) --------------
def _rot(phi, theta, omega):
    # PennyLane qml.Rot = RZ(omega) RY(theta) RZ(phi)
    c = np.cos(theta / 2.0)
    s = np.sin(theta / 2.0)
    return np.array(
        [[np.exp(-1j * (phi + omega) / 2.0) * c, -np.exp(1j * (phi - omega) / 2.0) * s],
         [np.exp(-1j * (phi - omega) / 2.0) * s,  np.exp(1j * (phi + omega) / 2.0) * c]],
        dtype=np.complex128)


def build_entangler_blocks(weights1, bits):
    """Packed real block matrices for StronglyEntanglingLayers(weights1[n, l], imprimitive=CZ).

    Returns W of shape (2*N*L, 2*DIM, 2*DIM):
        W[2*(n*L+l)]     = [[U^T.re, U^T.im], [-U^T.im, U^T.re]]   so [psi_r|psi_i] @ W == packed psi @ U^T
        W[2*(n*L+l) + 1] = row-half-swapped copy (folds the RZ phase half-swap).
    """
    w = np.asarray(weights1, dtype=np.float64)        # (N, L, 2, H, 3)
    bits_np = np.asarray(bits)                        # (DIM, H), wire 0 = MSB
    n_iter, n_layers, n_sub, H, _ = w.shape
    dim = bits_np.shape[0]
    out = np.zeros((2 * n_iter * n_layers, 2 * dim, 2 * dim), np.float32)
    for n in range(n_iter):
        for li in range(n_layers):
            U = np.eye(dim, dtype=np.complex128)
            for sub in range(n_sub):
                # tensor product of single-qubit Rot gates (wire 0 leftmost / MSB)
                rot_layer = np.array([[1.0 + 0j]])
                for j in range(H):
                    rot_layer = np.kron(rot_layer, _rot(*w[n, li, sub, j]))
                # CZ ring with range r = (sub % (H-1)) + 1  (PennyLane default ranges)
                cz = np.ones(dim, dtype=np.complex128)
                if H > 1:
                    r = (sub % (H - 1)) + 1
                    for j in range(H):
                        both = (bits_np[:, j] == 1) & (bits_np[:, (j + r) % H] == 1)
                        cz *= np.where(both, -1.0, 1.0)
                U = (cz[:, None] * rot_layer) @ U     # Rot layer first, then CZ ring
            Ut = U.T
            ur, ui = Ut.real, Ut.imag
            Wp = np.block([[ur, ui], [-ui, ur]])
            idx = 2 * (n * n_layers + li)
            out[idx] = Wp.astype(np.float32)
            out[idx + 1] = np.vstack([Wp[dim:], Wp[:dim]]).astype(np.float32)  # row-half swap
    return out


# --------------------------------- wrapper -----------------------------------
def qiddm_forward(x_nchw, weights1, w_up, b_up):
    b, c, h, w = x_nchw.shape
    D = c * h * w
    d_pad = _round_up(D + 1, 128)        # lane-dense; +1 column reserved for the folded bias

    # ---- host-side constant folding (float64; PCA fit / SVD has no Pallas equivalent) ----
    X = np.asarray(x_nchw, dtype=np.float64).reshape(b, D)
    mean = X.mean(axis=0, keepdims=True)               # (1, D)
    Xc = X - mean
    U, _, Vt = np.linalg.svd(Xc, full_matrices=False)
    # sklearn svd_flip (u_based) deterministic sign convention
    max_abs_idx = np.argmax(np.abs(U), axis=0)
    signs = np.sign(U[max_abs_idx, np.arange(U.shape[1])])
    signs[signs == 0] = 1.0
    comp = Vt[:HIDDEN] * signs[:HIDDEN, None]          # (H, D)
    compT = comp.T                                     # (D, H)

    bits = ((np.arange(DIM)[:, None] >> (HIDDEN - 1 - np.arange(HIDDEN)[None, :])) & 1)
    sgn = (2.0 * bits - 1.0).T                         # (H, DIM)   +1 if qubit bit==1 else -1
    zvals = (1.0 - 2.0 * bits)                         # (DIM, H)   PauliZ eigenvalues

    W_up = np.asarray(w_up, dtype=np.float64)          # (D, H)   linear_up weight
    B_up = np.asarray(b_up, dtype=np.float64).reshape(1, D)

    m_enc = 0.5 * compT @ sgn                          # (D, DIM)
    b_enc = -mean @ m_enc                              # (1, DIM)
    m_loop = 0.5 * zvals @ sgn                         # (DIM, DIM)
    m_out = zvals @ W_up.T                             # (DIM, D)

    # sign-duplicated / row-duplicated layouts consumed by the kernel
    m_enc2 = np.hstack([m_enc, -m_enc])                # (D, 2*DIM)   -> phi2 = [+phi | -phi]
    b_enc2 = np.hstack([b_enc, -b_enc])                # (1, 2*DIM)
    m_loop_dup = np.vstack([m_loop, m_loop])           # consumes sq = [re^2 | im^2]
    m_loop2 = np.hstack([m_loop_dup, -m_loop_dup])     # (2*DIM, 2*DIM)
    m_out2 = np.vstack([m_out, m_out])                 # (2*DIM, D)

    # ---- batch / lane padding; tile so each grid step moves a big slab and grid >= 2 ----
    bytes_per_row = d_pad * 2                                         # bf16 slabs
    target_rows = min(1024, max(16, _round_up(_cdiv(512 * 1024, bytes_per_row), 16)))
    b16 = _round_up(max(b, 1), 16)                                    # bf16-tile aligned rows
    tile_b = min(target_rows, max(16, _round_up(b16, 32) // 2))
    n_tiles = max(2, _cdiv(b16, tile_b))    # >= 2 grid steps: both v7x TensorCores get work
    b_pad = n_tiles * tile_b

    X_pad = np.zeros((b_pad, d_pad), np.float32)
    X_pad[:b, :D] = X
    X_pad[:, D] = 1.0                                   # bias column (folds b_enc into matmul)

    m_enc2_pad = np.zeros((d_pad, DIM2), np.float32)
    m_enc2_pad[:D] = m_enc2
    m_enc2_pad[D] = b_enc2[0]                           # bias row

    m_out2_pad = np.zeros((DIM2, d_pad), np.float32)
    m_out2_pad[:, :D] = m_out2
    b_out_pad = np.zeros((1, d_pad), np.float32)
    b_out_pad[:, :D] = B_up

    w_blocks = build_entangler_blocks(weights1, bits)   # (2*N*L, 2*DIM, 2*DIM) f32

    grid = (b_pad // tile_b,)

    # advisory cost model (lets XLA schedule/overlap around the custom call)
    flops = (4 * b_pad * d_pad * DIM2                                   # encode + decode matmuls
             + N_ITER * ((L - 1) * 4 * b_pad * DIM2 * DIM2 + 8 * b_pad * DIM2)
             + (N_ITER - 1) * 2 * b_pad * DIM2 * DIM2)
    transcendentals = N_ITER * 2 * b_pad * DIM2
    const_bytes = ((d_pad * DIM2 + DIM2 * d_pad) * 2 + DIM2 * DIM2 * 4
                   + w_blocks.size * 4 + d_pad * 4)
    bytes_accessed = 2 * b_pad * d_pad * 2 + const_bytes
    cost = pl.CostEstimate(flops=int(flops), transcendentals=int(transcendentals),
                           bytes_accessed=int(bytes_accessed))

    # explicit VMEM budget (x/out blocks double-buffered + constants + f32 intermediates)
    vmem_bytes = (4 * tile_b * d_pad * 2 + 2 * const_bytes + 10 * tile_b * DIM2 * 4)
    vmem_limit = int(min(max(2 * vmem_bytes, 32 << 20), 64 << 20))

    out = pl.pallas_call(
        qiddm_kernel,
        out_shape=jax.ShapeDtypeStruct((b_pad, d_pad), jnp.bfloat16),
        grid=grid,
        in_specs=[
            pl.BlockSpec((tile_b, d_pad), lambda i: (i, 0)),                  # x (bf16, bias col)
            pl.BlockSpec((d_pad, DIM2), lambda i: (0, 0)),                    # M_enc2 + bias row (bf16)
            pl.BlockSpec((DIM2, DIM2), lambda i: (0, 0)),                     # M_loop2 (f32)
            pl.BlockSpec((2 * N_ITER * L, DIM2, DIM2), lambda i: (0, 0, 0)),  # unitaries + swapped copies
            pl.BlockSpec((DIM2, d_pad), lambda i: (0, 0)),                    # M_out2 (bf16)
            pl.BlockSpec((1, d_pad), lambda i: (0, 0)),                       # b_out (f32)
        ],
        out_specs=pl.BlockSpec((tile_b, d_pad), lambda i: (i, 0)),
        compiler_params=pltpu.CompilerParams(
            dimension_semantics=("parallel",),
            vmem_limit_bytes=vmem_limit),
        cost_estimate=cost,
    )(jnp.asarray(X_pad, dtype=jnp.bfloat16),
      jnp.asarray(m_enc2_pad, dtype=jnp.bfloat16),
      jnp.asarray(m_loop2, dtype=jnp.float32),
      jnp.asarray(w_blocks),
      jnp.asarray(m_out2_pad, dtype=jnp.bfloat16),
      jnp.asarray(b_out_pad))

    return out[:b, :D].astype(jnp.float32).reshape(b, c, h, w)


# ----------------------------------- main ------------------------------------
if __name__ == "__main__":
    key = jax.random.PRNGKey(0)
    kx, kw, ku, kb = jax.random.split(key, 4)

    # small shapes: batch=8 (>= hidden_features so the PCA fit is valid), c=1, 8x8 images
    B, C, Hh, Ww = 8, 1, 8, 8
    D = C * Hh * Ww
    x = jax.random.normal(kx, (B, C, Hh, Ww), dtype=jnp.float32)

    # weights1 ~ randn(N, spectrum_layer, 2, hidden_features, 3) * 0.4  (deterministic)
    weights1 = jax.random.normal(kw, (N_ITER, L, 2, HIDDEN, 3), dtype=jnp.float32) * 0.4

    # linear_up parameters (nn.Linear(hidden_features, D)-style init, deterministic)
    bound = 1.0 / np.sqrt(HIDDEN)
    w_up = jax.random.uniform(ku, (D, HIDDEN), minval=-bound, maxval=bound, dtype=jnp.float32)
    b_up = jax.random.uniform(kb, (D,), minval=-bound, maxval=bound, dtype=jnp.float32)

    y = qiddm_forward(x, weights1, w_up, b_up)
    jax.block_until_ready(y)
    assert y.shape == (B, C, Hh, Ww)
    assert jnp.all(jnp.isfinite(y))
    print("KERNEL_OK")
</pallas_src>

<mosaic_0001>
module attributes {stable_mosaic.version = 11 : i64} {
  func.func @qiddm_kernel(%arg0: i32, %arg1: memref<16x128xbf16, #tpu.memory_space<vmem>>, %arg2: memref<128x32xbf16, #tpu.memory_space<vmem>>, %arg3: memref<32x32xf32, #tpu.memory_space<vmem>>, %arg4: memref<8x32x32xf32, #tpu.memory_space<vmem>>, %arg5: memref<32x128xbf16, #tpu.memory_space<vmem>>, %arg6: memref<1x128xf32, #tpu.memory_space<vmem>>, %arg7: memref<16x128xbf16, #tpu.memory_space<vmem>>) attributes {dimension_semantics = [#tpu.dimension_semantics<parallel>], iteration_bounds = array<i64: 2>, scalar_prefetch = 0 : i64, scratch_operands = 0 : i64, tpu.core_type = #tpu.core_type<tc>, window_params = [{transform_indices = @transform_0, window_bounds = array<i64: 16, 128>}, {pipeline_mode = #tpu.pipeline_mode<synchronous>, transform_indices = @transform_1, window_bounds = array<i64: 128, 32>}, {pipeline_mode = #tpu.pipeline_mode<synchronous>, transform_indices = @transform_2, window_bounds = array<i64: 32, 32>}, {pipeline_mode = #tpu.pipeline_mode<synchronous>, transform_indices = @transform_3, window_bounds = array<i64: 8, 32, 32>}, {pipeline_mode = #tpu.pipeline_mode<synchronous>, transform_indices = @transform_4, window_bounds = array<i64: 32, 128>}, {pipeline_mode = #tpu.pipeline_mode<synchronous>, transform_indices = @transform_5, window_bounds = array<i64: 1, 128>}, {transform_indices = @transform_6, window_bounds = array<i64: 16, 128>}]} {
    %c0 = arith.constant 0 : index
    %c0_0 = arith.constant 0 : index
    %0 = vector.load %arg1[%c0, %c0_0] : memref<16x128xbf16, #tpu.memory_space<vmem>>, vector<16x128xbf16>
    %c0_1 = arith.constant 0 : index
    %c0_2 = arith.constant 0 : index
    %1 = vector.load %arg2[%c0_1, %c0_2] : memref<128x32xbf16, #tpu.memory_space<vmem>>, vector<128x32xbf16>
    %cst = arith.constant dense<0.000000e+00> : vector<16x32xf32>
    %2 = tpu.matmul %0, %1, %cst {dimension_numbers = #tpu.dot_dimension_numbers<[1], [0], [0], [1], [0, 0, 1, 1], [], []>} : vector<16x128xbf16>, vector<128x32xbf16>, vector<16x32xf32> -> vector<16x32xf32>
    %3 = math.cos %2 : vector<16x32xf32>
    %4 = math.sin %2 : vector<16x32xf32>
    %c0_3 = arith.constant 0 : index
    %c0_4 = arith.constant 0 : index
    %c0_5 = arith.constant 0 : index
    %5 = vector.load %arg4[%c0_3, %c0_4, %c0_5] : memref<8x32x32xf32, #tpu.memory_space<vmem>>, vector<1x32x32xf32>
    %6 = vector.shape_cast %5 : vector<1x32x32xf32> to vector<32x32xf32>
    %7 = vector.extract_strided_slice %3 {offsets = [0, 0], sizes = [16, 1], strides = [1, 1]} : vector<16x32xf32> to vector<16x1xf32>
    %8 = vector.extract_strided_slice %4 {offsets = [0, 0], sizes = [16, 1], strides = [1, 1]} : vector<16x32xf32> to vector<16x1xf32>
    %9 = vector.extract_strided_slice %6 {offsets = [0, 0], sizes = [1, 32], strides = [1, 1]} : vector<32x32xf32> to vector<1x32xf32>
    %10 = vector.broadcast %7 : vector<16x1xf32> to vector<16x32xf32>
    %11 = vector.broadcast %9 : vector<1x32xf32> to vector<16x32xf32>
    %12 = arith.mulf %10, %11 : vector<16x32xf32>
    %13 = vector.extract_strided_slice %6 {offsets = [16, 0], sizes = [1, 32], strides = [1, 1]} : vector<32x32xf32> to vector<1x32xf32>
    %14 = vector.broadcast %8 : vector<16x1xf32> to vector<16x32xf32>
    %15 = vector.broadcast %13 : vector<1x32xf32> to vector<16x32xf32>
    %16 = arith.mulf %14, %15 : vector<16x32xf32>
    %17 = arith.addf %12, %16 : vector<16x32xf32>
    %18 = arith.mulf %3, %17 : vector<16x32xf32>
    %c2 = arith.constant 2 : index
    %c0_6 = arith.constant 0 : index
    %c0_7 = arith.constant 0 : index
    %19 = vector.load %arg4[%c2, %c0_6, %c0_7] : memref<8x32x32xf32, #tpu.memory_space<vmem>>, vector<1x32x32xf32>
    %20 = vector.shape_cast %19 : vector<1x32x32xf32> to vector<32x32xf32>
    %cst_8 = arith.constant dense<0.000000e+00> : vector<16x32xf32>
    %21 = tpu.matmul %18, %20, %cst_8 {dimension_numbers = #tpu.dot_dimension_numbers<[1], [0], [0], [1], [0, 0, 1, 1], [], []>} : vector<16x32xf32>, vector<32x32xf32>, vector<16x32xf32> -> vector<16x32xf32>
    %22 = arith.mulf %4, %17 : vector<16x32xf32>
    %c3 = arith.constant 3 : index
    %c0_9 = arith.constant 0 : index
    %c0_10 = arith.constant 0 : index
    %23 = vector.load %arg4[%c3, %c0_9, %c0_10] : memref<8x32x32xf32, #tpu.memory_space<vmem>>, vector<1x32x32xf32>
    %24 = vector.shape_cast %23 : vector<1x32x32xf32> to vector<32x32xf32>
    %cst_11 = arith.constant dense<0.000000e+00> : vector<16x32xf32>
    %25 = tpu.matmul %22, %24, %cst_11 {dimension_numbers = #tpu.dot_dimension_numbers<[1], [0], [0], [1], [0, 0, 1, 1], [], []>} : vector<16x32xf32>, vector<32x32xf32>, vector<16x32xf32> -> vector<16x32xf32>
    %26 = arith.addf %21, %25 : vector<16x32xf32>
    %27 = arith.mulf %26, %26 : vector<16x32xf32>
    %c0_12 = arith.constant 0 : index
    %c0_13 = arith.constant 0 : index
    %28 = vector.load %arg3[%c0_12, %c0_13] : memref<32x32xf32, #tpu.memory_space<vmem>>, vector<32x32xf32>
    %cst_14 = arith.constant dense<0.000000e+00> : vector<16x32xf32>
    %29 = tpu.matmul %27, %28, %cst_14 {dimension_numbers = #tpu.dot_dimension_numbers<[1], [0], [0], [1], [0, 0, 1, 1], [], []>} : vector<16x32xf32>, vector<32x32xf32>, vector<16x32xf32> -> vector<16x32xf32>
    %30 = math.cos %29 : vector<16x32xf32>
    %31 = math.sin %29 : vector<16x32xf32>
    %c4 = arith.constant 4 : index
    %c0_15 = arith.constant 0 : index
    %c0_16 = arith.constant 0 : index
    %32 = vector.load %arg4[%c4, %c0_15, %c0_16] : memref<8x32x32xf32, #tpu.memory_space<vmem>>, vector<1x32x32xf32>
    %33 = vector.shape_cast %32 : vector<1x32x32xf32> to vector<32x32xf32>
    %34 = vector.extract_strided_slice %30 {offsets = [0, 0], sizes = [16, 1], strides = [1, 1]} : vector<16x32xf32> to vector<16x1xf32>
    %35 = vector.extract_strided_slice %31 {offsets = [0, 0], sizes = [16, 1], strides = [1, 1]} : vector<16x32xf32> to vector<16x1xf32>
    %36 = vector.extract_strided_slice %33 {offsets = [0, 0], sizes = [1, 32], strides = [1, 1]} : vector<32x32xf32> to vector<1x32xf32>
    %37 = vector.broadcast %34 : vector<16x1xf32> to vector<16x32xf32>
    %38 = vector.broadcast %36 : vector<1x32xf32> to vector<16x32xf32>
    %39 = arith.mulf %37, %38 : vector<16x32xf32>
    %40 = vector.extract_strided_slice %33 {offsets = [16, 0], sizes = [1, 32], strides = [1, 1]} : vector<32x32xf32> to vector<1x32xf32>
    %41 = vector.broadcast %35 : vector<16x1xf32> to vector<16x32xf32>
    %42 = vector.broadcast %40 : vector<1x32xf32> to vector<16x32xf32>
    %43 = arith.mulf %41, %42 : vector<16x32xf32>
    %44 = arith.addf %39, %43 : vector<16x32xf32>
    %45 = arith.mulf %30, %44 : vector<16x32xf32>
    %c6 = arith.constant 6 : index
    %c0_17 = arith.constant 0 : index
    %c0_18 = arith.constant 0 : index
    %46 = vector.load %arg4[%c6, %c0_17, %c0_18] : memref<8x32x32xf32, #tpu.memory_space<vmem>>, vector<1x32x32xf32>
    %47 = vector.shape_cast %46 : vector<1x32x32xf32> to vector<32x32xf32>
    %cst_19 = arith.constant dense<0.000000e+00> : vector<16x32xf32>
    %48 = tpu.matmul %45, %47, %cst_19 {dimension_numbers = #tpu.dot_dimension_numbers<[1], [0], [0], [1], [0, 0, 1, 1], [], []>} : vector<16x32xf32>, vector<32x32xf32>, vector<16x32xf32> -> vector<16x32xf32>
    %49 = arith.mulf %31, %44 : vector<16x32xf32>
    %c7 = arith.constant 7 : index
    %c0_20 = arith.constant 0 : index
    %c0_21 = arith.constant 0 : index
    %50 = vector.load %arg4[%c7, %c0_20, %c0_21] : memref<8x32x32xf32, #tpu.memory_space<vmem>>, vector<1x32x32xf32>
    %51 = vector.shape_cast %50 : vector<1x32x32xf32> to vector<32x32xf32>
    %cst_22 = arith.constant dense<0.000000e+00> : vector<16x32xf32>
    %52 = tpu.matmul %49, %51, %cst_22 {dimension_numbers = #tpu.dot_dimension_numbers<[1], [0], [0], [1], [0, 0, 1, 1], [], []>} : vector<16x32xf32>, vector<32x32xf32>, vector<16x32xf32> -> vector<16x32xf32>
    %53 = arith.addf %48, %52 : vector<16x32xf32>
    %54 = arith.mulf %53, %53 : vector<16x32xf32>
    %c0_23 = arith.constant 0 : index
    %c0_24 = arith.constant 0 : index
    %55 = vector.load %arg5[%c0_23, %c0_24] : memref<32x128xbf16, #tpu.memory_space<vmem>>, vector<32x128xbf16>
    %cst_25 = arith.constant dense<0.000000e+00> : vector<16x128xf32>
    %56 = tpu.matmul %54, %55, %cst_25 {dimension_numbers = #tpu.dot_dimension_numbers<[1], [0], [0], [1], [0, 0, 1, 1], [], []>} : vector<16x32xf32>, vector<32x128xbf16>, vector<16x128xf32> -> vector<16x128xf32>
    %c0_26 = arith.constant 0 : index
    %c0_27 = arith.constant 0 : index
    %57 = vector.load %arg6[%c0_26, %c0_27] : memref<1x128xf32, #tpu.memory_space<vmem>>, vector<1x128xf32>
    %58 = vector.broadcast %57 : vector<1x128xf32> to vector<16x128xf32>
    %59 = arith.addf %56, %58 : vector<16x128xf32>
    %60 = arith.truncf %59 : vector<16x128xf32> to vector<16x128xbf16>
    %c0_28 = arith.constant 0 : index
    %c0_29 = arith.constant 0 : index
    %61 = vector.load %arg7[%c0_28, %c0_29] : memref<16x128xbf16, #tpu.memory_space<vmem>>, vector<16x128xbf16>
    tpu.vector_store %arg7[%c0_28, %c0_29], %60 {strides = array<i32>} : memref<16x128xbf16, #tpu.memory_space<vmem>>, vector<16x128xbf16>,
    return
  }
  func.func @transform_0(%arg0: i32) -> (i32, i32) {
    %c0_i32 = arith.constant 0 : i32
    %c0_i32_0 = arith.constant 0 : i32
    return %arg0, %c0_i32 : i32, i32
  }
  func.func @transform_1(%arg0: i32) -> (i32, i32) {
    %c0_i32 = arith.constant 0 : i32
    %c0_i32_0 = arith.constant 0 : i32
    %c0_i32_1 = arith.constant 0 : i32
    return %c0_i32, %c0_i32_0 : i32, i32
  }
  func.func @transform_2(%arg0: i32) -> (i32, i32) {
    %c0_i32 = arith.constant 0 : i32
    %c0_i32_0 = arith.constant 0 : i32
    %c0_i32_1 = arith.constant 0 : i32
    return %c0_i32, %c0_i32_0 : i32, i32
  }
  func.func @transform_3(%arg0: i32) -> (i32, i32, i32) {
    %c0_i32 = arith.constant 0 : i32
    %c0_i32_0 = arith.constant 0 : i32
    %c0_i32_1 = arith.constant 0 : i32
    %c0_i32_2 = arith.constant 0 : i32
    return %c0_i32, %c0_i32_0, %c0_i32_1 : i32, i32, i32
  }
  func.func @transform_4(%arg0: i32) -> (i32, i32) {
    %c0_i32 = arith.constant 0 : i32
    %c0_i32_0 = arith.constant 0 : i32
    %c0_i32_1 = arith.constant 0 : i32
    return %c0_i32, %c0_i32_0 : i32, i32
  }
  func.func @transform_5(%arg0: i32) -> (i32, i32) {
    %c0_i32 = arith.constant 0 : i32
    %c0_i32_0 = arith.constant 0 : i32
    %c0_i32_1 = arith.constant 0 : i32
    return %c0_i32, %c0_i32_0 : i32, i32
  }
  func.func @transform_6(%arg0: i32) -> (i32, i32) {
    %c0_i32 = arith.constant 0 : i32
    %c0_i32_0 = arith.constant 0 : i32
    return %arg0, %c0_i32 : i32, i32
  }
}

</mosaic_0001>

<llo_original>
// kernel: tpu_custom_call.1
$region0: #{tpu_custom_call.1}
  #allocation0 [shape = 'u32[]', space=smem, size = 0x4, offset = 0x4, fixed_abs, tag = 'smem constant byte address 0x4 - core index']
  #allocation1 [shape = 'u32[144,128]{1,0:T(1,128)}', space=vmem, size = 0x12000, scoped, tag = 'internal scratch']
  %s0 = inlined_call_operand.vmem [shape: bf16[32,128], index: 0, kind: input, shape index: {}]
  %s1 = inlined_call_operand.vmem [shape: bf16[128,32], index: 1, kind: input, shape index: {}]
  %s2 = inlined_call_operand.vmem [shape: f32[32,32], index: 2, kind: input, shape index: {}]
  %s3 = inlined_call_operand.hbm [shape: f32[8,32,32], index: 3, kind: input, shape index: {}]
  %s4 = inlined_call_operand.vmem [shape: bf16[32,128], index: 4, kind: input, shape index: {}]
  %s5 = inlined_call_operand.vmem [shape: f32[1,128], index: 5, kind: input, shape index: {}]
  %s6 = inlined_call_operand.hbm [shape: bf16[32,128], index: 6, kind: output, shape index: {}]
  %s7 = sld [smem:[#allocation0]]
  $region61: #{tpu_custom_call.1} parent=0
    _
  %s9 = ssub.s32 1, %s7
  %s10 = scalar_select 0, %s9, %s7
  $region1: #{tpu_custom_call.1} parent=0
    #allocation2 [shape = 'u8[131072]{0}', space=vmem, size = 0x20000, scoped, tag = 'input window, operand 3, single buffered']
    #allocation3 [shape = 's32[2]{0}', space=sflag, size = 0x8, scoped, tag = 'scoped memory for tpu_custom_call.1']
    #allocation4 [shape = 's32[2]{0}', space=sflag, size = 0x8, scoped, tag = 'scoped memory for tpu_custom_call.1']
    #allocation5 [shape = 'u8[8192]{0}', space=vmem, size = 0x2000, scoped, tag = 'output window, operand 0']
    %11 = vsyncpa [#allocation3], 0
    %12 = vsyncpa [#allocation4], 0
    %s13 = scalar_lea.sflag [#allocation4], 1
    %14 = vsyncpa %s13, 0
    loop: start=0, step=1, limit=4
    $region2: #{tpu_custom_call.1} parent=1 // loop_pre_header
      _
    $region3: #{tpu_custom_call.1} parent=1 // loop_header
      %s16 = sphi 0, %s20
      %p17 = scmp.ge.s32.totalorder %s16, 4
      %s26 = sphi 0, %s28
      %s29 = sphi 0, %s26
      %s30 = sphi 0, %s29
      %s46 = sphi 0, %s30
      %s50 = sphi 0, %s50
      %s52 = sphi 0, %s50
      %s53 = sphi 0, %s52
      %s67 = sphi 0, %s53
      %s71 = sphi 0, %s71
      %s73 = sphi 0, %s71
      %s74 = sphi 0, %s73
      %s88 = sphi 0, %s74
      %s92 = sphi 0, %s92
      %s94 = sphi 0, %s92
      %s95 = sphi 0, %s94
      %s109 = sphi 0, %s95
      %s113 = sphi 0, %s113
      %s115 = sphi 0, %s113
      %s116 = sphi 0, %s115
      %s130 = sphi 0, %s116
      %s134 = sphi 0, %s134
      %s136 = sphi 0, %s134
      %s137 = sphi 0, %s136
      %s151 = sphi 0, %s137
      %s157 = sphi 0, %s159
      %s160 = sphi 0, %s157
      %s161 = sphi 0, %s160
      %s177 = sphi 0, %s161
    $region4: #{tpu_custom_call.1} parent=1 // loop_header_branch
      %19 = sbr.rel (%p17) target = $region8
    $region5: #{tpu_custom_call.1} parent=1 // loop_body
      %s21 = ssub.s32 %s16, 1
      %s22 = ssub.s32 %s16, 2
      %s23 = sadd.s32 %s16, 1
      %s24 = ssub.s32 %s16, %s23
      %p25 = scmp.eq.s32.totalorder %s24, 0
      %s27 = sadd.s32 %s26, 1
      %s28 = scalar_select %p25, %s26, %s27
      %p31 = pneg %p25
      %p32 = scmp.eq.s32.totalorder %s16, 1
      %p33 = por %p31, %p32
      %p34 = scmp.ne.s32.totalorder %s26, %s29
      %p35 = scmp.eq.s32.totalorder %s16, 0
      %p36 = por %p34, %p35
      %p37 = scmp.ne.s32.totalorder %s26, %s29
      %p38 = scmp.eq.s32.totalorder %s21, 1
      %p39 = por %p37, %p38
      %p40 = scmp.ne.s32.totalorder %s29, %s30
      %p41 = scmp.eq.s32.totalorder %s21, 0
      %p42 = por %p40, %p41
      %p43 = scmp.ne.s32.totalorder %s29, %s30
      %p44 = scmp.eq.s32.totalorder %s22, 1
      %p45 = por %p43, %p44
      %p47 = scmp.ne.s32.totalorder %s30, %s46
      %p48 = scmp.eq.s32.totalorder %s22, 0
      %p49 = por %p47, %p48
      %s51 = sadd.s32 %s50, 1
      %p54 = scmp.eq.s32.totalorder %s16, 1
      %p55 = scmp.ne.s32.totalorder %s50, %s52
      %p56 = scmp.eq.s32.totalorder %s16, 0
      %p57 = por %p55, %p56
      %p58 = scmp.ne.s32.totalorder %s50, %s52
      %p59 = scmp.eq.s32.totalorder %s21, 1
      %p60 = por %p58, %p59
      %p61 = scmp.ne.s32.totalorder %s52, %s53
      %p62 = scmp.eq.s32.totalorder %s21, 0
      %p63 = por %p61, %p62
      %p64 = scmp.ne.s32.totalorder %s52, %s53
      %p65 = scmp.eq.s32.totalorder %s22, 1
      %p66 = por %p64, %p65
      %p68 = scmp.ne.s32.totalorder %s53, %s67
      %p69 = scmp.eq.s32.totalorder %s22, 0
      %p70 = por %p68, %p69
      %s72 = sadd.s32 %s71, 1
      %p75 = scmp.eq.s32.totalorder %s16, 1
      %p76 = scmp.ne.s32.totalorder %s71, %s73
      %p77 = scmp.eq.s32.totalorder %s16, 0
      %p78 = por %p76, %p77
      %p79 = scmp.ne.s32.totalorder %s71, %s73
      %p80 = scmp.eq.s32.totalorder %s21, 1
      %p81 = por %p79, %p80
      %p82 = scmp.ne.s32.totalorder %s73, %s74
      %p83 = scmp.eq.s32.totalorder %s21, 0
      %p84 = por %p82, %p83
      %p85 = scmp.ne.s32.totalorder %s73, %s74
      %p86 = scmp.eq.s32.totalorder %s22, 1
      %p87 = por %p85, %p86
      %p89 = scmp.ne.s32.totalorder %s74, %s88
      %p90 = scmp.eq.s32.totalorder %s22, 0
      %p91 = por %p89, %p90
      %s93 = sadd.s32 %s92, 1
      %p96 = scmp.eq.s32.totalorder %s16, 1
      %p97 = scmp.ne.s32.totalorder %s92, %s94
      %p98 = scmp.eq.s32.totalorder %s16, 0
      %p99 = por %p97, %p98
      %p100 = scmp.ne.s32.totalorder %s92, %s94
      %p101 = scmp.eq.s32.totalorder %s21, 1
      %p102 = por %p100, %p101
      %p103 = scmp.ne.s32.totalorder %s94, %s95
      %p104 = scmp.eq.s32.totalorder %s21, 0
      %p105 = por %p103, %p104
      %p106 = scmp.ne.s32.totalorder %s94, %s95
      %p107 = scmp.eq.s32.totalorder %s22, 1
      %p108 = por %p106, %p107
      %p110 = scmp.ne.s32.totalorder %s95, %s109
      %p111 = scmp.eq.s32.totalorder %s22, 0
      %p112 = por %p110, %p111
      %s114 = sadd.s32 %s113, 1
      %p117 = scmp.eq.s32.totalorder %s16, 1
      %p118 = scmp.ne.s32.totalorder %s113, %s115
      %p119 = scmp.eq.s32.totalorder %s16, 0
      %p120 = por %p118, %p119
      %p121 = scmp.ne.s32.totalorder %s113, %s115
      %p122 = scmp.eq.s32.totalorder %s21, 1
      %p123 = por %p121, %p122
      %p124 = scmp.ne.s32.totalorder %s115, %s116
      %p125 = scmp.eq.s32.totalorder %s21, 0
      %p126 = por %p124, %p125
      %p127 = scmp.ne.s32.totalorder %s115, %s116
      %p128 = scmp.eq.s32.totalorder %s22, 1
      %p129 = por %p127, %p128
      %p131 = scmp.ne.s32.totalorder %s116, %s130
      %p132 = scmp.eq.s32.totalorder %s22, 0
      %p133 = por %p131, %p132
      %s135 = sadd.s32 %s134, 1
      %p138 = scmp.eq.s32.totalorder %s16, 1
      %p139 = scmp.ne.s32.totalorder %s134, %s136
      %p140 = scmp.eq.s32.totalorder %s16, 0
      %p141 = por %p139, %p140
      %p142 = scmp.ne.s32.totalorder %s134, %s136
      %p143 = scmp.eq.s32.totalorder %s21, 1
      %p144 = por %p142, %p143
      %p145 = scmp.ne.s32.totalorder %s136, %s137
      %p146 = scmp.eq.s32.totalorder %s21, 0
      %p147 = por %p145, %p146
      %p148 = scmp.ne.s32.totalorder %s136, %s137
      %p149 = scmp.eq.s32.totalorder %s22, 1
      %p150 = por %p148, %p149
      %p152 = scmp.ne.s32.totalorder %s137, %s151
      %p153 = scmp.eq.s32.totalorder %s22, 0
      %p154 = por %p152, %p153
      %s155 = ssub.s32 %s16, %s23
      %p156 = scmp.eq.s32.totalorder %s155, 0
      %s158 = sadd.s32 %s157, 1
      %s159 = scalar_select %p156, %s157, %s158
      %p162 = pneg %p156
      %p163 = scmp.eq.s32.totalorder %s16, 1
      %p164 = por %p162, %p163
      %p165 = scmp.ne.s32.totalorder %s157, %s160
      %p166 = scmp.eq.s32.totalorder %s16, 0
      %p167 = por %p165, %p166
      %p168 = scmp.ne.s32.totalorder %s157, %s160
      %p169 = scmp.eq.s32.totalorder %s21, 1
      %p170 = por %p168, %p169
      %p171 = scmp.ne.s32.totalorder %s160, %s161
      %p172 = scmp.eq.s32.totalorder %s21, 0
      %p173 = por %p171, %p172
      %p174 = scmp.ne.s32.totalorder %s160, %s161
      %p175 = scmp.eq.s32.totalorder %s22, 1
      %p176 = por %p174, %p175
      %p178 = scmp.ne.s32.totalorder %s161, %s177
      %p179 = scmp.eq.s32.totalorder %s22, 0
      %p180 = por %p178, %p179
      %p181 = scmp.le.s32.totalorder 1, %s16
      %p182 = scmp.lt.s32.totalorder %s16, 3
      %p183 = pnand %p181, %p182
      %p184 = pneg %p183
      // Predicated region
      $region9: #{tpu_custom_call.1} parent=5 // pred_check
        _
      $region10: #{tpu_custom_call.1} parent=5 // pred_check_branch
        %186 = sbr.rel (%p183) target = $region12
      $region11: #{tpu_custom_call.1} parent=5 // pred_region
        %s187 = ssub.s32 %s16, 1
        // Predicated region
        $region13: #{tpu_custom_call.1} parent=11 // pred_check
          %p188 = pneg %p63
        $region14: #{tpu_custom_call.1} parent=11 // pred_check_branch
          %190 = sbr.rel (%p188) target = $region16
        $region15: #{tpu_custom_call.1} parent=11 // pred_region
          _
        $region16: #{tpu_custom_call.1} parent=11 // pred_fallthru
          _
        // Predicated region
        $region17: #{tpu_custom_call.1} parent=11 // pred_check
          %p191 = pneg %p84
        $region18: #{tpu_custom_call.1} parent=11 // pred_check_branch
          %193 = sbr.rel (%p191) target = $region20
        $region19: #{tpu_custom_call.1} parent=11 // pred_region
          _
        $region20: #{tpu_custom_call.1} parent=11 // pred_fallthru
          _
        // Predicated region
        $region21: #{tpu_custom_call.1} parent=11 // pred_check
          %p194 = pneg %p105
        $region22: #{tpu_custom_call.1} parent=11 // pred_check_branch
          %196 = sbr.rel (%p194) target = $region24
        $region23: #{tpu_custom_call.1} parent=11 // pred_region
          %s198 = ssub.s32 4096, 4096
          %199 = vsyncadd [#allocation3], %s198
          %s200 = sshll.u32 [#allocation2], 4
          %s201 = int_to_ptr.vmem [resolvable:$true] %s200
          %206 = dma.hbm_to_vmem [thread:$0]  %s3, 4096, %s201, [#allocation3], 128, 128, 8
        $region24: #{tpu_custom_call.1} parent=11 // pred_fallthru
          _
        // Predicated region
        $region25: #{tpu_custom_call.1} parent=11 // pred_check
          %p207 = pneg %p126
        $region26: #{tpu_custom_call.1} parent=11 // pred_check_branch
          %209 = sbr.rel (%p207) target = $region28
        $region27: #{tpu_custom_call.1} parent=11 // pred_region
          _
        $region28: #{tpu_custom_call.1} parent=11 // pred_fallthru
          _
        // Predicated region
        $region29: #{tpu_custom_call.1} parent=11 // pred_check
          %p210 = pneg %p147
        $region30: #{tpu_custom_call.1} parent=11 // pred_check_branch
          %212 = sbr.rel (%p210) target = $region32
        $region31: #{tpu_custom_call.1} parent=11 // pred_region
          _
        $region32: #{tpu_custom_call.1} parent=11 // pred_fallthru
          _
      $region12: #{tpu_custom_call.1} parent=5 // pred_fallthru
        _
      %p213 = scmp.lt.s32.totalorder %s16, 2
      // Predicated region
      $region33: #{tpu_custom_call.1} parent=5 // pred_check
        %p214 = pneg %p213
      $region34: #{tpu_custom_call.1} parent=5 // pred_check_branch
        %216 = sbr.rel (%p214) target = $region36
      $region35: #{tpu_custom_call.1} parent=5 // pred_region
        // Predicated region
        $region37: #{tpu_custom_call.1} parent=35 // pred_check
          %p217 = pneg %p36
        $region38: #{tpu_custom_call.1} parent=35 // pred_check_branch
          %219 = sbr.rel (%p217) target = $region40
        $region39: #{tpu_custom_call.1} parent=35 // pred_region
          %s220 = smul.u32 2, %s16
          %p221 = scmp.lt.s32.totalorder %s220, 3
          %s222 = scalar_select %p221, %s220, 3
          %s223 = smul.addr %s222, 4
          %s224 = scalar_lea.vmem %s0, %s223
          %s225 = smul.u32 2, %s16
        $region40: #{tpu_custom_call.1} parent=35 // pred_fallthru
          _
      $region36: #{tpu_custom_call.1} parent=5 // pred_fallthru
        _
      %p226 = scmp.le.s32.totalorder 1, %s16
      %p227 = scmp.lt.s32.totalorder %s16, 3
      %p228 = pnand %p226, %p227
      %p229 = pneg %p228
      // Predicated region
      $region41: #{tpu_custom_call.1} parent=5 // pred_check
        _
      $region42: #{tpu_custom_call.1} parent=5 // pred_check_branch
        %231 = sbr.rel (%p228) target = $region44
      $region43: #{tpu_custom_call.1} parent=5 // pred_region
        %s232 = ssub.s32 %s16, 1
        // Predicated region
        $region45: #{tpu_custom_call.1} parent=43 // pred_check
          %p233 = pneg %p105
        $region46: #{tpu_custom_call.1} parent=43 // pred_check_branch
          %235 = sbr.rel (%p233) target = $region48
        $region47: #{tpu_custom_call.1} parent=43 // pred_region
          %236 = dma.done [#allocation3], 4096
        $region48: #{tpu_custom_call.1} parent=43 // pred_fallthru
          _
        %s237 = smul.u32 2, %s21
        %p238 = scmp.lt.s32.totalorder %s237, 3
        %s239 = scalar_select %p238, %s237, 3
        %s240 = smul.addr %s239, 4
        %s241 = scalar_lea.vmem %s0, %s240
        %p242 = pneg %p42
        %p243 = pneg %p39
        %p244 = pneg %p63
        %p245 = pneg %p60
        %p246 = pneg %p84
        %p247 = pneg %p81
        %p248 = pneg %p105
        %p249 = pneg %p102
        %p250 = pneg %p126
        %p251 = pneg %p123
        %p252 = pneg %p147
        %p253 = pneg %p144
        %p254 = pneg %p173
        %p255 = pneg %p170
        %s256 = sand.u32 %s160, 1
        %s257 = scalar_lea.sflag [#allocation4], %s256
        %s258 = sand.u32 %s160, 1
        %s259 = smul.addr %s258, 8
        %s260 = scalar_lea.vmem [#allocation5], %s259
        %s261 = smul.u32 2, %s21
        %p262 = scmp.lt.s32.totalorder %s261, 3
        %s263 = scalar_select %p262, %s261, 3
        %s264 = smul.addr %s263, 4
        %s265 = scalar_lea.vmem %s0, %s264
        %s266 = smul.u32 2, %s21
        %s267 = smul.u32 2, %s21
        %v269 = vld [vmem:[%s265] sm:$0xf]
        %v270 = vld [vmem:[%s265 + $0x4] sm:$0xf]
        %v271 = vld [vmem:[%s1] sm:$0xf]
        %v272 = vld [vmem:[%s1 + $0x4] sm:$0xf]
        %v273 = vld [vmem:[%s1 + $0x8] sm:$0xf]
        %v274 = vld [vmem:[%s1 + $0xc] sm:$0xf]
        %v275 = vld [vmem:[%s1 + $0x10] sm:$0xf]
        %v276 = vld [vmem:[%s1 + $0x14] sm:$0xf]
        %v277 = vld [vmem:[%s1 + $0x18] sm:$0xf]
        %v278 = vld [vmem:[%s1 + $0x1c] sm:$0xf]
        %v279 = vld [vmem:[%s1 + $0x20] sm:$0xf]
        %v280 = vld [vmem:[%s1 + $0x24] sm:$0xf]
        %v281 = vld [vmem:[%s1 + $0x28] sm:$0xf]
        %v282 = vld [vmem:[%s1 + $0x2c] sm:$0xf]
        %v283 = vld [vmem:[%s1 + $0x30] sm:$0xf]
        %v284 = vld [vmem:[%s1 + $0x34] sm:$0xf]
        %v285 = vld [vmem:[%s1 + $0x38] sm:$0xf]
        %v286 = vld [vmem:[%s1 + $0x3c] sm:$0xf]
        %v289 = vunpack.c.l.b16 %v269
        %v290 = vunpack.c.l.b16 %v270
        %v291 = vpack.c.b16 %v290, %v289
        %v309 = vunpack.c.l.b16 %v271
        %v310 = vunpack.c.l.b16 %v272
        %v311 = vunpack.c.l.b16 %v273
        %v312 = vunpack.c.l.b16 %v274
        %v313 = vunpack.c.l.b16 %v275
        %v314 = vunpack.c.l.b16 %v276
        %v315 = vunpack.c.l.b16 %v277
        %v316 = vunpack.c.l.b16 %v278
        %v317 = vunpack.c.l.b16 %v279
        %v318 = vunpack.c.l.b16 %v280
        %v319 = vunpack.c.l.b16 %v281
        %v320 = vunpack.c.l.b16 %v282
        %v321 = vunpack.c.l.b16 %v283
        %v322 = vunpack.c.l.b16 %v284
        %v323 = vunpack.c.l.b16 %v285
        %v324 = vunpack.c.l.b16 %v286
        %v325 = vpack.c.b16 %v310, %v309
        %v326 = vpack.c.b16 %v312, %v311
        %v327 = vpack.c.b16 %v314, %v313
        %v328 = vpack.c.b16 %v316, %v315
        %v329 = vpack.c.b16 %v318, %v317
        %v330 = vpack.c.b16 %v320, %v319
        %v331 = vpack.c.b16 %v322, %v321
        %v332 = vpack.c.b16 %v324, %v323
        %341 = vmatprep.subr.bf16.mxu0 0
        %342 = vmatpush1.bf16.msra.mxu0 %v325
        %343 = vmatprep.subr.bf16.mxu0 0
        %344 = vmatpush1.bf16.msra.mxu0 %v326
        %345 = vmatprep.subr.bf16.mxu0 0
        %346 = vmatpush1.bf16.msra.mxu0 %v327
        %347 = vmatprep.subr.bf16.mxu0 0
        %348 = vmatpush1.bf16.msra.mxu0 %v328
        %349 = vmatprep.subr.bf16.mxu0 0
        %350 = vmatpush1.bf16.msra.mxu0 %v329
        %351 = vmatprep.subr.bf16.mxu0 0
        %352 = vmatpush1.bf16.msra.mxu0 %v330
        %353 = vmatprep.subr.bf16.mxu0 0
        %354 = vmatpush1.bf16.msra.mxu0 %v331
        %355 = vmatprep.subr.bf16.mxu0 0
        %356 = vmatpush1.bf16.msra.mxu0 %v332
        %357 = vmatprep.subr.bf16.mxu0 0
        %358 = vmatpush1.bf16.msra.mxu0 0
        %359 = vmatprep.subr.bf16.mxu0 0
        %360 = vmatpush1.bf16.msra.mxu0 0
        %361 = vmatprep.subr.bf16.mxu0 0
        %362 = vmatpush1.bf16.msra.mxu0 0
        %363 = vmatprep.subr.bf16.mxu0 0
        %364 = vmatpush1.bf16.msra.mxu0 0
        %365 = vmatprep.subr.bf16.mxu0 0
        %366 = vmatpush1.bf16.msra.mxu0 0
        %367 = vmatprep.subr.bf16.mxu0 0
        %368 = vmatpush1.bf16.msra.mxu0 0
        %369 = vmatprep.subr.bf16.mxu0 0
        %370 = vmatpush1.bf16.msra.mxu0 0
        %371 = vmatprep.subr.bf16.mxu0 0
        %372 = vmatpush1.bf16.msra.mxu0 0
        %373 = vmatprep.mubr.bf16.mxu0 0
        %374 = vmatmul.mubr.bf16.gmra.mrb[0].mxu0 %v291
        %v375 = vpop.f32.mrb[0].mxu0
        %v376 = vadd.f32 0.0, %v375
        %v377 = vpop.f32.mrb[0].mxu0
        %v378 = vpop.f32.mrb[0].mxu0
        %v379 = vadd.f32 0.0, %v378
        %v380 = vpop.f32.mrb[0].mxu0
        %381 = vdwg.mxu0
        %v382 = vand.u32 2147483647, %v376
        %vm383 = vcmp.le.f32.partialorder %v382, 0.7853982
        %vm384 = vcmp.lt.s32.totalorder %v376, 0
        %v385 = vand.u32 %v376, 2139095040
        %v386 = vshrl.u32 %v385, 23
        %v387 = vsub.s32 %v386, 127
        %v388 = vand.u32 2147483647, %v376
        %v389 = vand.u32 %v388, 8388607
        %v390 = vor.u32 %v389, 8388608
        %v391 = vsub.s32 0, %v390
        %v392 = vadd.s32 %v387, 1
        %vm393 = vcmp.gt.s32.totalorder %v392, 0
        %v394 = vsel %vm393, %v392, 0
        %v395 = vshrl.u32 %v394, 5
        %v396 = vand.u32 %v394, 31
        %v397 = vsub.s32 32, %v396
        %v398 = vshrl.u32 683565275, %v397
        %v399 = vshll.u32 683565275, %v396
        %v400 = vshrl.u32 2475754826, %v397
        %v401 = vor.u32 %v399, %v400
        %v402 = vshll.u32 2475754826, %v396
        %v403 = vshrl.u32 2131351028, %v397
        %v404 = vor.u32 %v402, %v403
        %v405 = vshll.u32 2131351028, %v396
        %v406 = vshrl.u32 2102212464, %v397
        %v407 = vor.u32 %v405, %v406
        %v408 = vshll.u32 2102212464, %v396
        %v409 = vshrl.u32 920167782, %v397
        %v410 = vor.u32 %v408, %v409
        %v411 = vshll.u32 920167782, %v396
        %v412 = vshrl.u32 1326507024, %v397
        %v413 = vor.u32 %v411, %v412
        %vm414 = vcmp.lt.s32.totalorder %v395, 1
        %vm415 = vcmp.lt.s32.totalorder %v395, 2
        %vm416 = vcmp.lt.s32.totalorder %v395, 3
        %vm417 = vcmp.lt.s32.totalorder %v395, 4
        %v418 = vsel %vm414, %v398, %v401
        %v419 = vsel %vm417, %v407, 2102212464
        %v420 = vsel %vm416, %v404, %v419
        %v421 = vsel %vm415, %v418, %v420
        %v422 = vsel %vm414, %v401, %v404
        %v423 = vsel %vm417, %v410, 920167782
        %v424 = vsel %vm416, %v407, %v423
        %v425 = vsel %vm415, %v422, %v424
        %v426 = vsel %vm414, %v404, %v407
        %v427 = vsel %vm417, %v413, 1326507024
        %v428 = vsel %vm416, %v410, %v427
        %v429 = vsel %vm415, %v426, %v428
        %v430 = vshll.u32 %v390, 8
        %v431 = vmul.u32.u64.compose %v430, %v429
        %v432 = vextract.low.u32 %v431
        %v433 = vextract.high.u32 %v431
        %v434 = vmul.u32.u64.compose %v430, %v425
        %v435 = vextract.low.u32 %v434
        %v436 = vextract.high.u32 %v434
        %v437 = vmul.u32 %v430, %v421
        %v438 = vadd.s32 %v433, %v435
        %vm439 = vc.u32 %v433, %v435
        %v440 = vadd.s32 %v436, 1
        %v441 = vsel %vm439, %v440, %v436
        %v442 = vadd.s32 %v437, %v441
        %v443 = vadd.s32 %v442, 536870912
        %v444 = vshrl.u32 %v443, 30
        %v445 = vshll.u32 %v444, 30
        %v446 = vsub.s32 %v442, %v445
        %vm447 = vcmp.lt.s32.totalorder %v446, 0
        %v448 = vsub.s32 0, %v446
        %v449 = vsel %vm447, %v448, %v446
        %v450 = vclz %v449
        %v451 = vsub.s32 %v450, 2
        %vm452 = vcmp.gt.s32.totalorder 0, %v451
        %v453 = vsel %vm452, 0, %v451
        %v454 = vsub.s32 32, %v453
        %v455 = vshll.u32 %v446, %v453
        %v456 = vshrl.u32 %v438, %v454
        %v457 = vor.u32 %v455, %v456
        %v458 = vsub.s32 4294967266, %v453
        %v459 = vadd.s32 %v458, 127
        %v460 = vshll.u32 %v459, 23
        %v461 = vor.u32 4788187, %v460
        %v462 = vand.u32 2147483647, %v461
        %v464 = vcvt.s32.f32 %v457
        %v465 = vmul.f32 %v464, %v462
        %v466 = vxor.u32 %v465, 2147483648
        %v467 = vsel %vm384, %v466, %v465
        %v468 = vsub.s32 4, %v444
        %v469 = vsel %vm384, %v468, %v444
        %v470 = vsel %vm383, %v376, %v467
        %v471 = vsel %vm383, 0, %v469
        %v472 = vcosq.f32.pop %v470
        %v473 = vsinq.f32.pop %v470
        %vm474 = vweird.f32 %v376
        %v475 = vand.u32 %v471, 3
        %vm476 = vcmp.lt.s32.totalorder %v475, 2
        %vm477 = vcmp.eq.s32.totalorder %v475, 0
        %v478 = vxor.u32 %v473, 2147483648
        %v479 = vsel %vm477, %v472, %v478
        %vm480 = vcmp.eq.s32.totalorder %v475, 2
        %v481 = vxor.u32 %v472, 2147483648
        %v482 = vsel %vm480, %v481, %v473
        %v483 = vsel %vm476, %v479, %v482
        %v484 = vsel %vm474, nan, %v483
        %v485 = vand.u32 2147483647, %v379
        %vm486 = vcmp.le.f32.partialorder %v485, 0.7853982
        %vm487 = vcmp.lt.s32.totalorder %v379, 0
        %v488 = vand.u32 %v379, 2139095040
        %v489 = vshrl.u32 %v488, 23
        %v490 = vsub.s32 %v489, 127
        %v491 = vand.u32 2147483647, %v379
        %v492 = vand.u32 %v491, 8388607
        %v493 = vor.u32 %v492, 8388608
        %v494 = vsub.s32 0, %v493
        %v495 = vadd.s32 %v490, 1
        %vm496 = vcmp.gt.s32.totalorder %v495, 0
        %v497 = vsel %vm496, %v495, 0
        %v498 = vshrl.u32 %v497, 5
        %v499 = vand.u32 %v497, 31
        %v500 = vsub.s32 32, %v499
        %v501 = vshrl.u32 683565275, %v500
        %v502 = vshll.u32 683565275, %v499
        %v503 = vshrl.u32 2475754826, %v500
        %v504 = vor.u32 %v502, %v503
        %v505 = vshll.u32 2475754826, %v499
        %v506 = vshrl.u32 2131351028, %v500
        %v507 = vor.u32 %v505, %v506
        %v508 = vshll.u32 2131351028, %v499
        %v509 = vshrl.u32 2102212464, %v500
        %v510 = vor.u32 %v508, %v509
        %v511 = vshll.u32 2102212464, %v499
        %v512 = vshrl.u32 920167782, %v500
        %v513 = vor.u32 %v511, %v512
        %v514 = vshll.u32 920167782, %v499
        %v515 = vshrl.u32 1326507024, %v500
        %v516 = vor.u32 %v514, %v515
        %vm517 = vcmp.lt.s32.totalorder %v498, 1
        %vm518 = vcmp.lt.s32.totalorder %v498, 2
        %vm519 = vcmp.lt.s32.totalorder %v498, 3
        %vm520 = vcmp.lt.s32.totalorder %v498, 4
        %v521 = vsel %vm517, %v501, %v504
        %v522 = vsel %vm520, %v510, 2102212464
        %v523 = vsel %vm519, %v507, %v522
        %v524 = vsel %vm518, %v521, %v523
        %v525 = vsel %vm517, %v504, %v507
        %v526 = vsel %vm520, %v513, 920167782
        %v527 = vsel %vm519, %v510, %v526
        %v528 = vsel %vm518, %v525, %v527
        %v529 = vsel %vm517, %v507, %v510
        %v530 = vsel %vm520, %v516, 1326507024
        %v531 = vsel %vm519, %v513, %v530
        %v532 = vsel %vm518, %v529, %v531
        %v533 = vshll.u32 %v493, 8
        %v534 = vmul.u32.u64.compose %v533, %v532
        %v535 = vextract.low.u32 %v534
        %v536 = vextract.high.u32 %v534
        %v537 = vmul.u32.u64.compose %v533, %v528
        %v538 = vextract.low.u32 %v537
        %v539 = vextract.high.u32 %v537
        %v540 = vmul.u32 %v533, %v524
        %v541 = vadd.s32 %v536, %v538
        %vm542 = vc.u32 %v536, %v538
        %v543 = vadd.s32 %v539, 1
        %v544 = vsel %vm542, %v543, %v539
        %v545 = vadd.s32 %v540, %v544
        %v546 = vadd.s32 %v545, 536870912
        %v547 = vshrl.u32 %v546, 30
        %v548 = vshll.u32 %v547, 30
        %v549 = vsub.s32 %v545, %v548
        %vm550 = vcmp.lt.s32.totalorder %v549, 0
        %v551 = vsub.s32 0, %v549
        %v552 = vsel %vm550, %v551, %v549
        %v553 = vclz %v552
        %v554 = vsub.s32 %v553, 2
        %vm555 = vcmp.gt.s32.totalorder 0, %v554
        %v556 = vsel %vm555, 0, %v554
        %v557 = vsub.s32 32, %v556
        %v558 = vshll.u32 %v549, %v556
        %v559 = vshrl.u32 %v541, %v557
        %v560 = vor.u32 %v558, %v559
        %v561 = vsub.s32 4294967266, %v556
        %v562 = vadd.s32 %v561, 127
        %v563 = vshll.u32 %v562, 23
        %v564 = vor.u32 4788187, %v563
        %v565 = vand.u32 2147483647, %v564
        %v567 = vcvt.s32.f32 %v560
        %v568 = vmul.f32 %v567, %v565
        %v569 = vxor.u32 %v568, 2147483648
        %v570 = vsel %vm487, %v569, %v568
        %v571 = vsub.s32 4, %v547
        %v572 = vsel %vm487, %v571, %v547
        %v573 = vsel %vm486, %v379, %v570
        %v574 = vsel %vm486, 0, %v572
        %v575 = vcosq.f32.pop %v573
        %v576 = vsinq.f32.pop %v573
        %vm577 = vweird.f32 %v379
        %v578 = vand.u32 %v574, 3
        %vm579 = vcmp.lt.s32.totalorder %v578, 2
        %vm580 = vcmp.eq.s32.totalorder %v578, 0
        %v581 = vxor.u32 %v576, 2147483648
        %v582 = vsel %vm580, %v575, %v581
        %vm583 = vcmp.eq.s32.totalorder %v578, 2
        %v584 = vxor.u32 %v575, 2147483648
        %v585 = vsel %vm583, %v584, %v576
        %v586 = vsel %vm579, %v582, %v585
        %v587 = vsel %vm577, nan, %v586
        %v588 = vand.u32 2147483647, %v376
        %vm589 = vcmp.le.f32.partialorder %v588, 0.7853982
        %vm590 = vcmp.lt.s32.totalorder %v376, 0
        %v591 = vand.u32 %v376, 2139095040
        %v592 = vshrl.u32 %v591, 23
        %v593 = vsub.s32 %v592, 127
        %v594 = vand.u32 2147483647, %v376
        %v595 = vand.u32 %v594, 8388607
        %v596 = vor.u32 %v595, 8388608
        %v597 = vsub.s32 0, %v596
        %v598 = vadd.s32 %v593, 1
        %vm599 = vcmp.gt.s32.totalorder %v598, 0
        %v600 = vsel %vm599, %v598, 0
        %v601 = vshrl.u32 %v600, 5
        %v602 = vand.u32 %v600, 31
        %v603 = vsub.s32 32, %v602
        %v604 = vshrl.u32 683565275, %v603
        %v605 = vshll.u32 683565275, %v602
        %v606 = vshrl.u32 2475754826, %v603
        %v607 = vor.u32 %v605, %v606
        %v608 = vshll.u32 2475754826, %v602
        %v609 = vshrl.u32 2131351028, %v603
        %v610 = vor.u32 %v608, %v609
        %v611 = vshll.u32 2131351028, %v602
        %v612 = vshrl.u32 2102212464, %v603
        %v613 = vor.u32 %v611, %v612
        %v614 = vshll.u32 2102212464, %v602
        %v615 = vshrl.u32 920167782, %v603
        %v616 = vor.u32 %v614, %v615
        %v617 = vshll.u32 920167782, %v602
        %v618 = vshrl.u32 1326507024, %v603
        %v619 = vor.u32 %v617, %v618
        %vm620 = vcmp.lt.s32.totalorder %v601, 1
        %vm621 = vcmp.lt.s32.totalorder %v601, 2
        %vm622 = vcmp.lt.s32.totalorder %v601, 3
        %vm623 = vcmp.lt.s32.totalorder %v601, 4
        %v624 = vsel %vm620, %v604, %v607
        %v625 = vsel %vm623, %v613, 2102212464
        %v626 = vsel %vm622, %v610, %v625
        %v627 = vsel %vm621, %v624, %v626
        %v628 = vsel %vm620, %v607, %v610
        %v629 = vsel %vm623, %v616, 920167782
        %v630 = vsel %vm622, %v613, %v629
        %v631 = vsel %vm621, %v628, %v630
        %v632 = vsel %vm620, %v610, %v613
        %v633 = vsel %vm623, %v619, 1326507024
        %v634 = vsel %vm622, %v616, %v633
        %v635 = vsel %vm621, %v632, %v634
        %v636 = vshll.u32 %v596, 8
        %v637 = vmul.u32.u64.compose %v636, %v635
        %v638 = vextract.low.u32 %v637
        %v639 = vextract.high.u32 %v637
        %v640 = vmul.u32.u64.compose %v636, %v631
        %v641 = vextract.low.u32 %v640
        %v642 = vextract.high.u32 %v640
        %v643 = vmul.u32 %v636, %v627
        %v644 = vadd.s32 %v639, %v641
        %vm645 = vc.u32 %v639, %v641
        %v646 = vadd.s32 %v642, 1
        %v647 = vsel %vm645, %v646, %v642
        %v648 = vadd.s32 %v643, %v647
        %v649 = vadd.s32 %v648, 536870912
        %v650 = vshrl.u32 %v649, 30
        %v651 = vshll.u32 %v650, 30
        %v652 = vsub.s32 %v648, %v651
        %vm653 = vcmp.lt.s32.totalorder %v652, 0
        %v654 = vsub.s32 0, %v652
        %v655 = vsel %vm653, %v654, %v652
        %v656 = vclz %v655
        %v657 = vsub.s32 %v656, 2
        %vm658 = vcmp.gt.s32.totalorder 0, %v657
        %v659 = vsel %vm658, 0, %v657
        %v660 = vsub.s32 32, %v659
        %v661 = vshll.u32 %v652, %v659
        %v662 = vshrl.u32 %v644, %v660
        %v663 = vor.u32 %v661, %v662
        %v664 = vsub.s32 4294967266, %v659
        %v665 = vadd.s32 %v664, 127
        %v666 = vshll.u32 %v665, 23
        %v667 = vor.u32 4788187, %v666
        %v668 = vand.u32 2147483647, %v667
        %v670 = vcvt.s32.f32 %v663
        %v671 = vmul.f32 %v670, %v668
        %v672 = vxor.u32 %v671, 2147483648
        %v673 = vsel %vm590, %v672, %v671
        %v674 = vsub.s32 4, %v650
        %v675 = vsel %vm590, %v674, %v650
        %v676 = vsel %vm589, %v376, %v673
        %v677 = vsel %vm589, 0, %v675
        %v678 = vcosq.f32.pop %v676
        %v679 = vsinq.f32.pop %v676
        %vm680 = vweird.f32 %v376
        %v681 = vadd.s32 %v677, 3
        %v682 = vand.u32 %v681, 3
        %vm683 = vcmp.lt.s32.totalorder %v682, 2
        %vm684 = vcmp.eq.s32.totalorder %v682, 0
        %v685 = vxor.u32 %v679, 2147483648
        %v686 = vsel %vm684, %v678, %v685
        %vm687 = vcmp.eq.s32.totalorder %v682, 2
        %v688 = vxor.u32 %v678, 2147483648
        %v689 = vsel %vm687, %v688, %v679
        %v690 = vsel %vm683, %v686, %v689
        %v691 = vsel %vm680, nan, %v690
        %v692 = vand.u32 2147483647, %v379
        %vm693 = vcmp.le.f32.partialorder %v692, 0.7853982
        %vm694 = vcmp.lt.s32.totalorder %v379, 0
        %v695 = vand.u32 %v379, 2139095040
        %v696 = vshrl.u32 %v695, 23
        %v697 = vsub.s32 %v696, 127
        %v698 = vand.u32 2147483647, %v379
        %v699 = vand.u32 %v698, 8388607
        %v700 = vor.u32 %v699, 8388608
        %v701 = vsub.s32 0, %v700
        %v702 = vadd.s32 %v697, 1
        %vm703 = vcmp.gt.s32.totalorder %v702, 0
        %v704 = vsel %vm703, %v702, 0
        %v705 = vshrl.u32 %v704, 5
        %v706 = vand.u32 %v704, 31
        %v707 = vsub.s32 32, %v706
        %v708 = vshrl.u32 683565275, %v707
        %v709 = vshll.u32 683565275, %v706
        %v710 = vshrl.u32 2475754826, %v707
        %v711 = vor.u32 %v709, %v710
        %v712 = vshll.u32 2475754826, %v706
        %v713 = vshrl.u32 2131351028, %v707
        %v714 = vor.u32 %v712, %v713
        %v715 = vshll.u32 2131351028, %v706
        %v716 = vshrl.u32 2102212464, %v707
        %v717 = vor.u32 %v715, %v716
        %v718 = vshll.u32 2102212464, %v706
        %v719 = vshrl.u32 920167782, %v707
        %v720 = vor.u32 %v718, %v719
        %v721 = vshll.u32 920167782, %v706
        %v722 = vshrl.u32 1326507024, %v707
        %v723 = vor.u32 %v721, %v722
        %vm724 = vcmp.lt.s32.totalorder %v705, 1
        %vm725 = vcmp.lt.s32.totalorder %v705, 2
        %vm726 = vcmp.lt.s32.totalorder %v705, 3
        %vm727 = vcmp.lt.s32.totalorder %v705, 4
        %v728 = vsel %vm724, %v708, %v711
        %v729 = vsel %vm727, %v717, 2102212464
        %v730 = vsel %vm726, %v714, %v729
        %v731 = vsel %vm725, %v728, %v730
        %v732 = vsel %vm724, %v711, %v714
        %v733 = vsel %vm727, %v720, 920167782
        %v734 = vsel %vm726, %v717, %v733
        %v735 = vsel %vm725, %v732, %v734
        %v736 = vsel %vm724, %v714, %v717
        %v737 = vsel %vm727, %v723, 1326507024
        %v738 = vsel %vm726, %v720, %v737
        %v739 = vsel %vm725, %v736, %v738
        %v740 = vshll.u32 %v700, 8
        %v741 = vmul.u32.u64.compose %v740, %v739
        %v742 = vextract.low.u32 %v741
        %v743 = vextract.high.u32 %v741
        %v744 = vmul.u32.u64.compose %v740, %v735
        %v745 = vextract.low.u32 %v744
        %v746 = vextract.high.u32 %v744
        %v747 = vmul.u32 %v740, %v731
        %v748 = vadd.s32 %v743, %v745
        %vm749 = vc.u32 %v743, %v745
        %v750 = vadd.s32 %v746, 1
        %v751 = vsel %vm749, %v750, %v746
        %v752 = vadd.s32 %v747, %v751
        %v753 = vadd.s32 %v752, 536870912
        %v754 = vshrl.u32 %v753, 30
        %v755 = vshll.u32 %v754, 30
        %v756 = vsub.s32 %v752, %v755
        %vm757 = vcmp.lt.s32.totalorder %v756, 0
        %v758 = vsub.s32 0, %v756
        %v759 = vsel %vm757, %v758, %v756
        %v760 = vclz %v759
        %v761 = vsub.s32 %v760, 2
        %vm762 = vcmp.gt.s32.totalorder 0, %v761
        %v763 = vsel %vm762, 0, %v761
        %v764 = vsub.s32 32, %v763
        %v765 = vshll.u32 %v756, %v763
        %v766 = vshrl.u32 %v748, %v764
        %v767 = vor.u32 %v765, %v766
        %v768 = vsub.s32 4294967266, %v763
        %v769 = vadd.s32 %v768, 127
        %v770 = vshll.u32 %v769, 23
        %v771 = vor.u32 4788187, %v770
        %v772 = vand.u32 2147483647, %v771
        %v774 = vcvt.s32.f32 %v767
        %v775 = vmul.f32 %v774, %v772
        %v776 = vxor.u32 %v775, 2147483648
        %v777 = vsel %vm694, %v776, %v775
        %v778 = vsub.s32 4, %v754
        %v779 = vsel %vm694, %v778, %v754
        %v780 = vsel %vm693, %v379, %v777
        %v781 = vsel %vm693, 0, %v779
        %v782 = vcosq.f32.pop %v780
        %v783 = vsinq.f32.pop %v780
        %vm784 = vweird.f32 %v379
        %v785 = vadd.s32 %v781, 3
        %v786 = vand.u32 %v785, 3
        %vm787 = vcmp.lt.s32.totalorder %v786, 2
        %vm788 = vcmp.eq.s32.totalorder %v786, 0
        %v789 = vxor.u32 %v783, 2147483648
        %v790 = vsel %vm788, %v782, %v789
        %vm791 = vcmp.eq.s32.totalorder %v786, 2
        %v792 = vxor.u32 %v782, 2147483648
        %v793 = vsel %vm791, %v792, %v783
        %v794 = vsel %vm787, %v790, %v793
        %v795 = vsel %vm784, nan, %v794
        %v796 = vld [vmem:[#allocation2] sm:$0xff]
        %v797 = vld [vmem:[#allocation2 + $0x10] sm:$0xff]
        %799 = vset.pattern.permute.xlu0 0
        %800 = vperm.xlu0 %799, %v484
        %v801 = vpop.permute.xlu0 %800
        %804 = vset.pattern.permute.xlu0 0
        %805 = vperm.xlu0 %804, %v587
        %v806 = vpop.permute.xlu0 %805
        %v808 = vlaneseq
        %v809 = vshrl.u32 %v808, 7
        %v810 = vsub.s32 0, %v809
        %v811 = vrot.slane %v796, %v810
        %v812 = vmul.f32 %v801, %v811
        %v813 = vmul.f32 %v806, %v811
        %815 = vset.pattern.permute.xlu0 0
        %816 = vperm.xlu0 %815, %v691
        %v817 = vpop.permute.xlu0 %816
        %820 = vset.pattern.permute.xlu0 0
        %821 = vperm.xlu0 %820, %v795
        %v822 = vpop.permute.xlu0 %821
        %v824 = vlaneseq
        %v825 = vshrl.u32 %v824, 7
        %v826 = vsub.s32 0, %v825
        %v827 = vrot.slane %v797, %v826
        %v828 = vmul.f32 %v817, %v827
        %v829 = vmul.f32 %v822, %v827
        %v830 = vadd.f32 %v812, %v828
        %v831 = vadd.f32 %v813, %v829
        %v832 = vmul.f32 %v484, %v830
        %v833 = vmul.f32 %v587, %v831
        %s834 = scalar_lea.vmem [#allocation2], 64
        %v835 = vld [vmem:[%s834] sm:$0xff]
        %v836 = vld [vmem:[%s834 + $0x8] sm:$0xff]
        %v837 = vld [vmem:[%s834 + $0x10] sm:$0xff]
        %v838 = vld [vmem:[%s834 + $0x18] sm:$0xff]
        %v839 = vmul.f32 %v691, %v830
        %v840 = vmul.f32 %v795, %v831
        %s841 = scalar_lea.vmem [#allocation2], 96
        %v842 = vld [vmem:[%s841] sm:$0xff]
        %v843 = vld [vmem:[%s841 + $0x8] sm:$0xff]
        %v844 = vld [vmem:[%s841 + $0x10] sm:$0xff]
        %v845 = vld [vmem:[%s841 + $0x18] sm:$0xff]
        %vm846 = vcmask 261120
        %v848 = vsel %vm846, %v839, 0
        %v851 = vsel %vm846, %v840, 0
        %853 = vmatprep.subr.mxu0 0.0
        %854 = vmatpush1.msra.mxu0 %v842
        %855 = vmatprep.subr.mxu0 0.0
        %856 = vmatpush1.msra.mxu0 %v843
        %857 = vmatprep.subr.mxu0 0.0
        %858 = vmatpush1.msra.mxu0 %v844
        %859 = vmatprep.subr.mxu0 0.0
        %860 = vmatpush1.msra.mxu0 %v845
        %861 = vmatprep.subr.mxu0 0.0
        %862 = vmatpush1.msra.mxu0 0.0
        %863 = vmatprep.subr.mxu0 0.0
        %864 = vmatpush1.msra.mxu0 0.0
        %865 = vmatprep.subr.mxu0 0.0
        %866 = vmatpush1.msra.mxu0 0.0
        %867 = vmatprep.subr.mxu0 0.0
        %868 = vmatpush1.msra.mxu0 0.0
        %869 = vmatprep.subr.mxu0 0.0
        %870 = vmatpush1.msra.mxu0 0.0
        %871 = vmatprep.subr.mxu0 0.0
        %872 = vmatpush1.msra.mxu0 0.0
        %873 = vmatprep.subr.mxu0 0.0
        %874 = vmatpush1.msra.mxu0 0.0
        %875 = vmatprep.subr.mxu0 0.0
        %876 = vmatpush1.msra.mxu0 0.0
        %877 = vmatprep.subr.mxu0 0.0
        %878 = vmatpush1.msra.mxu0 0.0
        %879 = vmatprep.subr.mxu0 0.0
        %880 = vmatpush1.msra.mxu0 0.0
        %881 = vmatprep.subr.mxu0 0.0
        %882 = vmatpush1.msra.mxu0 0.0
        %883 = vmatprep.subr.mxu0 0.0
        %884 = vmatpush1.msra.mxu0 0.0
        %885 = vmatprep.subr.mxu0 0.0
        %886 = vmatpush1.msra.mxu0 0.0
        %887 = vmatprep.subr.mxu0 0.0
        %888 = vmatpush1.msra.mxu0 0.0
        %889 = vmatprep.subr.mxu0 0.0
        %890 = vmatpush1.msra.mxu0 0.0
        %891 = vmatprep.subr.mxu0 0.0
        %892 = vmatpush1.msra.mxu0 0.0
        %893 = vmatprep.subr.mxu0 0.0
        %894 = vmatpush1.msra.mxu0 0.0
        %895 = vmatprep.subr.mxu0 0.0
        %896 = vmatpush1.msra.mxu0 0.0
        %897 = vmatprep.subr.mxu0 0.0
        %898 = vmatpush1.msra.mxu0 0.0
        %899 = vmatprep.subr.mxu0 0.0
        %900 = vmatpush1.msra.mxu0 0.0
        %901 = vmatprep.subr.mxu0 0.0
        %902 = vmatpush1.msra.mxu0 0.0
        %903 = vmatprep.subr.mxu0 0.0
        %904 = vmatpush1.msra.mxu0 0.0
        %905 = vmatprep.subr.mxu0 0.0
        %906 = vmatpush1.msra.mxu0 0.0
        %907 = vmatprep.subr.mxu0 0.0
        %908 = vmatpush1.msra.mxu0 0.0
        %909 = vmatprep.subr.mxu0 0.0
        %910 = vmatpush1.msra.mxu0 0.0
        %911 = vmatprep.subr.mxu0 0.0
        %912 = vmatpush1.msra.mxu0 0.0
        %913 = vmatprep.subr.mxu0 0.0
        %914 = vmatpush1.msra.mxu0 0.0
        %915 = vmatprep.subr.mxu0 0.0
        %916 = vmatpush1.msra.mxu0 0.0
        %917 = vmatprep.mubr.f32.mxu0 0.0
        %918 = vmatmul.mubr.f32.gmra.mrb[0].mxu0 %v848
        %v919 = vpop.f32.mrb[0].mxu0
        %v920 = vadd.f32 0.0, %v919
        %v921 = vpop.f32.mrb[0].mxu0
        %922 = vmatprep.mubr.f32.mxu0 0.0
        %923 = vmatmul.mubr.f32.gmra.mrb[0].mxu0 %v851
        %v924 = vpop.f32.mrb[0].mxu0
        %v925 = vadd.f32 0.0, %v924
        %v926 = vpop.f32.mrb[0].mxu0
        %927 = vdwg.mxu0
        %v929 = vsel %vm846, %v832, 0
        %v932 = vsel %vm846, %v833, 0
        %934 = vmatprep.subr.mxu0 0.0
        %935 = vmatpush1.msra.mxu0 %v835
        %936 = vmatprep.subr.mxu0 0.0
        %937 = vmatpush1.msra.mxu0 %v836
        %938 = vmatprep.subr.mxu0 0.0
        %939 = vmatpush1.msra.mxu0 %v837
        %940 = vmatprep.subr.mxu0 0.0
        %941 = vmatpush1.msra.mxu0 %v838
        %942 = vmatprep.subr.mxu0 0.0
        %943 = vmatpush1.msra.mxu0 0.0
        %944 = vmatprep.subr.mxu0 0.0
        %945 = vmatpush1.msra.mxu0 0.0
        %946 = vmatprep.subr.mxu0 0.0
        %947 = vmatpush1.msra.mxu0 0.0
        %948 = vmatprep.subr.mxu0 0.0
        %949 = vmatpush1.msra.mxu0 0.0
        %950 = vmatprep.subr.mxu0 0.0
        %951 = vmatpush1.msra.mxu0 0.0
        %952 = vmatprep.subr.mxu0 0.0
        %953 = vmatpush1.msra.mxu0 0.0
        %954 = vmatprep.subr.mxu0 0.0
        %955 = vmatpush1.msra.mxu0 0.0
        %956 = vmatprep.subr.mxu0 0.0
        %957 = vmatpush1.msra.mxu0 0.0
        %958 = vmatprep.subr.mxu0 0.0
        %959 = vmatpush1.msra.mxu0 0.0
        %960 = vmatprep.subr.mxu0 0.0
        %961 = vmatpush1.msra.mxu0 0.0
        %962 = vmatprep.subr.mxu0 0.0
        %963 = vmatpush1.msra.mxu0 0.0
        %964 = vmatprep.subr.mxu0 0.0
        %965 = vmatpush1.msra.mxu0 0.0
        %966 = vmatprep.subr.mxu0 0.0
        %967 = vmatpush1.msra.mxu0 0.0
        %968 = vmatprep.subr.mxu0 0.0
        %969 = vmatpush1.msra.mxu0 0.0
        %970 = vmatprep.subr.mxu0 0.0
        %971 = vmatpush1.msra.mxu0 0.0
        %972 = vmatprep.subr.mxu0 0.0
        %973 = vmatpush1.msra.mxu0 0.0
        %974 = vmatprep.subr.mxu0 0.0
        %975 = vmatpush1.msra.mxu0 0.0
        %976 = vmatprep.subr.mxu0 0.0
        %977 = vmatpush1.msra.mxu0 0.0
        %978 = vmatprep.subr.mxu0 0.0
        %979 = vmatpush1.msra.mxu0 0.0
        %980 = vmatprep.subr.mxu0 0.0
        %981 = vmatpush1.msra.mxu0 0.0
        %982 = vmatprep.subr.mxu0 0.0
        %983 = vmatpush1.msra.mxu0 0.0
        %984 = vmatprep.subr.mxu0 0.0
        %985 = vmatpush1.msra.mxu0 0.0
        %986 = vmatprep.subr.mxu0 0.0
        %987 = vmatpush1.msra.mxu0 0.0
        %988 = vmatprep.subr.mxu0 0.0
        %989 = vmatpush1.msra.mxu0 0.0
        %990 = vmatprep.subr.mxu0 0.0
        %991 = vmatpush1.msra.mxu0 0.0
        %992 = vmatprep.subr.mxu0 0.0
        %993 = vmatpush1.msra.mxu0 0.0
        %994 = vmatprep.subr.mxu0 0.0
        %995 = vmatpush1.msra.mxu0 0.0
        %996 = vmatprep.subr.mxu0 0.0
        %997 = vmatpush1.msra.mxu0 0.0
        %998 = vmatprep.mubr.f32.mxu0 0.0
        %999 = vmatmul.mubr.f32.gmra.mrb[0].mxu0 %v929
        %v1000 = vpop.f32.mrb[0].mxu0
        %v1001 = vadd.f32 %v920, %v1000
        %v1002 = vpop.f32.mrb[0].mxu0
        %1003 = vmatprep.mubr.f32.mxu0 0.0
        %1004 = vmatmul.mubr.f32.gmra.mrb[0].mxu0 %v932
        %v1005 = vpop.f32.mrb[0].mxu0
        %v1006 = vadd.f32 %v925, %v1005
        %v1007 = vpop.f32.mrb[0].mxu0
        %1008 = vdwg.mxu0
        %v1009 = vmul.f32 %v1001, %v1001
        %v1010 = vmul.f32 %v1006, %v1006
        %v1011 = vld [vmem:[%s2] sm:$0xff]
        %v1012 = vld [vmem:[%s2 + $0x8] sm:$0xff]
        %v1013 = vld [vmem:[%s2 + $0x10] sm:$0xff]
        %v1014 = vld [vmem:[%s2 + $0x18] sm:$0xff]
        %v1016 = vsel %vm846, %v1009, 0
        %v1019 = vsel %vm846, %v1010, 0
        %1021 = vmatprep.subr.mxu0 0.0
        %1022 = vmatpush1.msra.mxu0 %v1011
        %1023 = vmatprep.subr.mxu0 0.0
        %1024 = vmatpush1.msra.mxu0 %v1012
        %1025 = vmatprep.subr.mxu0 0.0
        %1026 = vmatpush1.msra.mxu0 %v1013
        %1027 = vmatprep.subr.mxu0 0.0
        %1028 = vmatpush1.msra.mxu0 %v1014
        %1029 = vmatprep.subr.mxu0 0.0
        %1030 = vmatpush1.msra.mxu0 0.0
        %1031 = vmatprep.subr.mxu0 0.0
        %1032 = vmatpush1.msra.mxu0 0.0
        %1033 = vmatprep.subr.mxu0 0.0
        %1034 = vmatpush1.msra.mxu0 0.0
        %1035 = vmatprep.subr.mxu0 0.0
        %1036 = vmatpush1.msra.mxu0 0.0
        %1037 = vmatprep.subr.mxu0 0.0
        %1038 = vmatpush1.msra.mxu0 0.0
        %1039 = vmatprep.subr.mxu0 0.0
        %1040 = vmatpush1.msra.mxu0 0.0
        %1041 = vmatprep.subr.mxu0 0.0
        %1042 = vmatpush1.msra.mxu0 0.0
        %1043 = vmatprep.subr.mxu0 0.0
        %1044 = vmatpush1.msra.mxu0 0.0
        %1045 = vmatprep.subr.mxu0 0.0
        %1046 = vmatpush1.msra.mxu0 0.0
        %1047 = vmatprep.subr.mxu0 0.0
        %1048 = vmatpush1.msra.mxu0 0.0
        %1049 = vmatprep.subr.mxu0 0.0
        %1050 = vmatpush1.msra.mxu0 0.0
        %1051 = vmatprep.subr.mxu0 0.0
        %1052 = vmatpush1.msra.mxu0 0.0
        %1053 = vmatprep.subr.mxu0 0.0
        %1054 = vmatpush1.msra.mxu0 0.0
        %1055 = vmatprep.subr.mxu0 0.0
        %1056 = vmatpush1.msra.mxu0 0.0
        %1057 = vmatprep.subr.mxu0 0.0
        %1058 = vmatpush1.msra.mxu0 0.0
        %1059 = vmatprep.subr.mxu0 0.0
        %1060 = vmatpush1.msra.mxu0 0.0
        %1061 = vmatprep.subr.mxu0 0.0
        %1062 = vmatpush1.msra.mxu0 0.0
        %1063 = vmatprep.subr.mxu0 0.0
        %1064 = vmatpush1.msra.mxu0 0.0
        %1065 = vmatprep.subr.mxu0 0.0
        %1066 = vmatpush1.msra.mxu0 0.0
        %1067 = vmatprep.subr.mxu0 0.0
        %1068 = vmatpush1.msra.mxu0 0.0
        %1069 = vmatprep.subr.mxu0 0.0
        %1070 = vmatpush1.msra.mxu0 0.0
        %1071 = vmatprep.subr.mxu0 0.0
        %1072 = vmatpush1.msra.mxu0 0.0
        %1073 = vmatprep.subr.mxu0 0.0
        %1074 = vmatpush1.msra.mxu0 0.0
        %1075 = vmatprep.subr.mxu0 0.0
        %1076 = vmatpush1.msra.mxu0 0.0
        %1077 = vmatprep.subr.mxu0 0.0
        %1078 = vmatpush1.msra.mxu0 0.0
        %1079 = vmatprep.subr.mxu0 0.0
        %1080 = vmatpush1.msra.mxu0 0.0
        %1081 = vmatprep.subr.mxu0 0.0
        %1082 = vmatpush1.msra.mxu0 0.0
        %1083 = vmatprep.subr.mxu0 0.0
        %1084 = vmatpush1.msra.mxu0 0.0
        %1085 = vmatprep.mubr.f32.mxu0 0.0
        %1086 = vmatmul.mubr.f32.gmra.mrb[0].mxu0 %v1016
        %v1087 = vpop.f32.mrb[0].mxu0
        %v1088 = vadd.f32 0.0, %v1087
        %v1089 = vpop.f32.mrb[0].mxu0
        %1090 = vmatprep.mubr.f32.mxu0 0.0
        %1091 = vmatmul.mubr.f32.gmra.mrb[0].mxu0 %v1019
        %v1092 = vpop.f32.mrb[0].mxu0
        %v1093 = vadd.f32 0.0, %v1092
        %v1094 = vpop.f32.mrb[0].mxu0
        %1095 = vdwg.mxu0
        %v1096 = vand.u32 2147483647, %v1088
        %vm1097 = vcmp.le.f32.partialorder %v1096, 0.7853982
        %vm1098 = vcmp.lt.s32.totalorder %v1088, 0
        %v1099 = vand.u32 %v1088, 2139095040
        %v1100 = vshrl.u32 %v1099, 23
        %v1101 = vsub.s32 %v1100, 127
        %v1102 = vand.u32 2147483647, %v1088
        %v1103 = vand.u32 %v1102, 8388607
        %v1104 = vor.u32 %v1103, 8388608
        %v1105 = vsub.s32 0, %v1104
        %v1106 = vadd.s32 %v1101, 1
        %vm1107 = vcmp.gt.s32.totalorder %v1106, 0
        %v1108 = vsel %vm1107, %v1106, 0
        %v1109 = vshrl.u32 %v1108, 5
        %v1110 = vand.u32 %v1108, 31
        %v1111 = vsub.s32 32, %v1110
        %v1112 = vshrl.u32 683565275, %v1111
        %v1113 = vshll.u32 683565275, %v1110
        %v1114 = vshrl.u32 2475754826, %v1111
        %v1115 = vor.u32 %v1113, %v1114
        %v1116 = vshll.u32 2475754826, %v1110
        %v1117 = vshrl.u32 2131351028, %v1111
        %v1118 = vor.u32 %v1116, %v1117
        %v1119 = vshll.u32 2131351028, %v1110
        %v1120 = vshrl.u32 2102212464, %v1111
        %v1121 = vor.u32 %v1119, %v1120
        %v1122 = vshll.u32 2102212464, %v1110
        %v1123 = vshrl.u32 920167782, %v1111
        %v1124 = vor.u32 %v1122, %v1123
        %v1125 = vshll.u32 920167782, %v1110
        %v1126 = vshrl.u32 1326507024, %v1111
        %v1127 = vor.u32 %v1125, %v1126
        %vm1128 = vcmp.lt.s32.totalorder %v1109, 1
        %vm1129 = vcmp.lt.s32.totalorder %v1109, 2
        %vm1130 = vcmp.lt.s32.totalorder %v1109, 3
        %vm1131 = vcmp.lt.s32.totalorder %v1109, 4
        %v1132 = vsel %vm1128, %v1112, %v1115
        %v1133 = vsel %vm1131, %v1121, 2102212464
        %v1134 = vsel %vm1130, %v1118, %v1133
        %v1135 = vsel %vm1129, %v1132, %v1134
        %v1136 = vsel %vm1128, %v1115, %v1118
        %v1137 = vsel %vm1131, %v1124, 920167782
        %v1138 = vsel %vm1130, %v1121, %v1137
        %v1139 = vsel %vm1129, %v1136, %v1138
        %v1140 = vsel %vm1128, %v1118, %v1121
        %v1141 = vsel %vm1131, %v1127, 1326507024
        %v1142 = vsel %vm1130, %v1124, %v1141
        %v1143 = vsel %vm1129, %v1140, %v1142
        %v1144 = vshll.u32 %v1104, 8
        %v1145 = vmul.u32.u64.compose %v1144, %v1143
        %v1146 = vextract.low.u32 %v1145
        %v1147 = vextract.high.u32 %v1145
        %v1148 = vmul.u32.u64.compose %v1144, %v1139
        %v1149 = vextract.low.u32 %v1148
        %v1150 = vextract.high.u32 %v1148
        %v1151 = vmul.u32 %v1144, %v1135
        %v1152 = vadd.s32 %v1147, %v1149
        %vm1153 = vc.u32 %v1147, %v1149
        %v1154 = vadd.s32 %v1150, 1
        %v1155 = vsel %vm1153, %v1154, %v1150
        %v1156 = vadd.s32 %v1151, %v1155
        %v1157 = vadd.s32 %v1156, 536870912
        %v1158 = vshrl.u32 %v1157, 30
        %v1159 = vshll.u32 %v1158, 30
        %v1160 = vsub.s32 %v1156, %v1159
        %vm1161 = vcmp.lt.s32.totalorder %v1160, 0
        %v1162 = vsub.s32 0, %v1160
        %v1163 = vsel %vm1161, %v1162, %v1160
        %v1164 = vclz %v1163
        %v1165 = vsub.s32 %v1164, 2
        %vm1166 = vcmp.gt.s32.totalorder 0, %v1165
        %v1167 = vsel %vm1166, 0, %v1165
        %v1168 = vsub.s32 32, %v1167
        %v1169 = vshll.u32 %v1160, %v1167
        %v1170 = vshrl.u32 %v1152, %v1168
        %v1171 = vor.u32 %v1169, %v1170
        %v1172 = vsub.s32 4294967266, %v1167
        %v1173 = vadd.s32 %v1172, 127
        %v1174 = vshll.u32 %v1173, 23
        %v1175 = vor.u32 4788187, %v1174
        %v1176 = vand.u32 2147483647, %v1175
        %v1178 = vcvt.s32.f32 %v1171
        %v1179 = vmul.f32 %v1178, %v1176
        %v1180 = vxor.u32 %v1179, 2147483648
        %v1181 = vsel %vm1098, %v1180, %v1179
        %v1182 = vsub.s32 4, %v1158
        %v1183 = vsel %vm1098, %v1182, %v1158
        %v1184 = vsel %vm1097, %v1088, %v1181
        %v1185 = vsel %vm1097, 0, %v1183
        %v1186 = vcosq.f32.pop %v1184
        %v1187 = vsinq.f32.pop %v1184
        %vm1188 = vweird.f32 %v1088
        %v1189 = vand.u32 %v1185, 3
        %vm1190 = vcmp.lt.s32.totalorder %v1189, 2
        %vm1191 = vcmp.eq.s32.totalorder %v1189, 0
        %v1192 = vxor.u32 %v1187, 2147483648
        %v1193 = vsel %vm1191, %v1186, %v1192
        %vm1194 = vcmp.eq.s32.totalorder %v1189, 2
        %v1195 = vxor.u32 %v1186, 2147483648
        %v1196 = vsel %vm1194, %v1195, %v1187
        %v1197 = vsel %vm1190, %v1193, %v1196
        %v1198 = vsel %vm1188, nan, %v1197
        %v1199 = vand.u32 2147483647, %v1093
        %vm1200 = vcmp.le.f32.partialorder %v1199, 0.7853982
        %vm1201 = vcmp.lt.s32.totalorder %v1093, 0
        %v1202 = vand.u32 %v1093, 2139095040
        %v1203 = vshrl.u32 %v1202, 23
        %v1204 = vsub.s32 %v1203, 127
        %v1205 = vand.u32 2147483647, %v1093
        %v1206 = vand.u32 %v1205, 8388607
        %v1207 = vor.u32 %v1206, 8388608
        %v1208 = vsub.s32 0, %v1207
        %v1209 = vadd.s32 %v1204, 1
        %vm1210 = vcmp.gt.s32.totalorder %v1209, 0
        %v1211 = vsel %vm1210, %v1209, 0
        %v1212 = vshrl.u32 %v1211, 5
        %v1213 = vand.u32 %v1211, 31
        %v1214 = vsub.s32 32, %v1213
        %v1215 = vshrl.u32 683565275, %v1214
        %v1216 = vshll.u32 683565275, %v1213
        %v1217 = vshrl.u32 2475754826, %v1214
        %v1218 = vor.u32 %v1216, %v1217
        %v1219 = vshll.u32 2475754826, %v1213
        %v1220 = vshrl.u32 2131351028, %v1214
        %v1221 = vor.u32 %v1219, %v1220
        %v1222 = vshll.u32 2131351028, %v1213
        %v1223 = vshrl.u32 2102212464, %v1214
        %v1224 = vor.u32 %v1222, %v1223
        %v1225 = vshll.u32 2102212464, %v1213
        %v1226 = vshrl.u32 920167782, %v1214
        %v1227 = vor.u32 %v1225, %v1226
        %v1228 = vshll.u32 920167782, %v1213
        %v1229 = vshrl.u32 1326507024, %v1214
        %v1230 = vor.u32 %v1228, %v1229
        %vm1231 = vcmp.lt.s32.totalorder %v1212, 1
        %vm1232 = vcmp.lt.s32.totalorder %v1212, 2
        %vm1233 = vcmp.lt.s32.totalorder %v1212, 3
        %vm1234 = vcmp.lt.s32.totalorder %v1212, 4
        %v1235 = vsel %vm1231, %v1215, %v1218
        %v1236 = vsel %vm1234, %v1224, 2102212464
        %v1237 = vsel %vm1233, %v1221, %v1236
        %v1238 = vsel %vm1232, %v1235, %v1237
        %v1239 = vsel %vm1231, %v1218, %v1221
        %v1240 = vsel %vm1234, %v1227, 920167782
        %v1241 = vsel %vm1233, %v1224, %v1240
        %v1242 = vsel %vm1232, %v1239, %v1241
        %v1243 = vsel %vm1231, %v1221, %v1224
        %v1244 = vsel %vm1234, %v1230, 1326507024
        %v1245 = vsel %vm1233, %v1227, %v1244
        %v1246 = vsel %vm1232, %v1243, %v1245
        %v1247 = vshll.u32 %v1207, 8
        %v1248 = vmul.u32.u64.compose %v1247, %v1246
        %v1249 = vextract.low.u32 %v1248
        %v1250 = vextract.high.u32 %v1248
        %v1251 = vmul.u32.u64.compose %v1247, %v1242
        %v1252 = vextract.low.u32 %v1251
        %v1253 = vextract.high.u32 %v1251
        %v1254 = vmul.u32 %v1247, %v1238
        %v1255 = vadd.s32 %v1250, %v1252
        %vm1256 = vc.u32 %v1250, %v1252
        %v1257 = vadd.s32 %v1253, 1
        %v1258 = vsel %vm1256, %v1257, %v1253
        %v1259 = vadd.s32 %v1254, %v1258
        %v1260 = vadd.s32 %v1259, 536870912
        %v1261 = vshrl.u32 %v1260, 30
        %v1262 = vshll.u32 %v1261, 30
        %v1263 = vsub.s32 %v1259, %v1262
        %vm1264 = vcmp.lt.s32.totalorder %v1263, 0
        %v1265 = vsub.s32 0, %v1263
        %v1266 = vsel %vm1264, %v1265, %v1263
        %v1267 = vclz %v1266
        %v1268 = vsub.s32 %v1267, 2
        %vm1269 = vcmp.gt.s32.totalorder 0, %v1268
        %v1270 = vsel %vm1269, 0, %v1268
        %v1271 = vsub.s32 32, %v1270
        %v1272 = vshll.u32 %v1263, %v1270
        %v1273 = vshrl.u32 %v1255, %v1271
        %v1274 = vor.u32 %v1272, %v1273
        %v1275 = vsub.s32 4294967266, %v1270
        %v1276 = vadd.s32 %v1275, 127
        %v1277 = vshll.u32 %v1276, 23
        %v1278 = vor.u32 4788187, %v1277
        %v1279 = vand.u32 2147483647, %v1278
        %v1281 = vcvt.s32.f32 %v1274
        %v1282 = vmul.f32 %v1281, %v1279
        %v1283 = vxor.u32 %v1282, 2147483648
        %v1284 = vsel %vm1201, %v1283, %v1282
        %v1285 = vsub.s32 4, %v1261
        %v1286 = vsel %vm1201, %v1285, %v1261
        %v1287 = vsel %vm1200, %v1093, %v1284
        %v1288 = vsel %vm1200, 0, %v1286
        %v1289 = vcosq.f32.pop %v1287
        %v1290 = vsinq.f32.pop %v1287
        %vm1291 = vweird.f32 %v1093
        %v1292 = vand.u32 %v1288, 3
        %vm1293 = vcmp.lt.s32.totalorder %v1292, 2
        %vm1294 = vcmp.eq.s32.totalorder %v1292, 0
        %v1295 = vxor.u32 %v1290, 2147483648
        %v1296 = vsel %vm1294, %v1289, %v1295
        %vm1297 = vcmp.eq.s32.totalorder %v1292, 2
        %v1298 = vxor.u32 %v1289, 2147483648
        %v1299 = vsel %vm1297, %v1298, %v1290
        %v1300 = vsel %vm1293, %v1296, %v1299
        %v1301 = vsel %vm1291, nan, %v1300
        %v1302 = vand.u32 2147483647, %v1088
        %vm1303 = vcmp.le.f32.partialorder %v1302, 0.7853982
        %vm1304 = vcmp.lt.s32.totalorder %v1088, 0
        %v1305 = vand.u32 %v1088, 2139095040
        %v1306 = vshrl.u32 %v1305, 23
        %v1307 = vsub.s32 %v1306, 127
        %v1308 = vand.u32 2147483647, %v1088
        %v1309 = vand.u32 %v1308, 8388607
        %v1310 = vor.u32 %v1309, 8388608
        %v1311 = vsub.s32 0, %v1310
        %v1312 = vadd.s32 %v1307, 1
        %vm1313 = vcmp.gt.s32.totalorder %v1312, 0
        %v1314 = vsel %vm1313, %v1312, 0
        %v1315 = vshrl.u32 %v1314, 5
        %v1316 = vand.u32 %v1314, 31
        %v1317 = vsub.s32 32, %v1316
        %v1318 = vshrl.u32 683565275, %v1317
        %v1319 = vshll.u32 683565275, %v1316
        %v1320 = vshrl.u32 2475754826, %v1317
        %v1321 = vor.u32 %v1319, %v1320
        %v1322 = vshll.u32 2475754826, %v1316
        %v1323 = vshrl.u32 2131351028, %v1317
        %v1324 = vor.u32 %v1322, %v1323
        %v1325 = vshll.u32 2131351028, %v1316
        %v1326 = vshrl.u32 2102212464, %v1317
        %v1327 = vor.u32 %v1325, %v1326
        %v1328 = vshll.u32 2102212464, %v1316
        %v1329 = vshrl.u32 920167782, %v1317
        %v1330 = vor.u32 %v1328, %v1329
        %v1331 = vshll.u32 920167782, %v1316
        %v1332 = vshrl.u32 1326507024, %v1317
        %v1333 = vor.u32 %v1331, %v1332
        %vm1334 = vcmp.lt.s32.totalorder %v1315, 1
        %vm1335 = vcmp.lt.s32.totalorder %v1315, 2
        %vm1336 = vcmp.lt.s32.totalorder %v1315, 3
        %vm1337 = vcmp.lt.s32.totalorder %v1315, 4
        %v1338 = vsel %vm1334, %v1318, %v1321
        %v1339 = vsel %vm1337, %v1327, 2102212464
        %v1340 = vsel %vm1336, %v1324, %v1339
        %v1341 = vsel %vm1335, %v1338, %v1340
        %v1342 = vsel %vm1334, %v1321, %v1324
        %v1343 = vsel %vm1337, %v1330, 920167782
        %v1344 = vsel %vm1336, %v1327, %v1343
        %v1345 = vsel %vm1335, %v1342, %v1344
        %v1346 = vsel %vm1334, %v1324, %v1327
        %v1347 = vsel %vm1337, %v1333, 1326507024
        %v1348 = vsel %vm1336, %v1330, %v1347
        %v1349 = vsel %vm1335, %v1346, %v1348
        %v1350 = vshll.u32 %v1310, 8
        %v1351 = vmul.u32.u64.compose %v1350, %v1349
        %v1352 = vextract.low.u32 %v1351
        %v1353 = vextract.high.u32 %v1351
        %v1354 = vmul.u32.u64.compose %v1350, %v1345
        %v1355 = vextract.low.u32 %v1354
        %v1356 = vextract.high.u32 %v1354
        %v1357 = vmul.u32 %v1350, %v1341
        %v1358 = vadd.s32 %v1353, %v1355
        %vm1359 = vc.u32 %v1353, %v1355
        %v1360 = vadd.s32 %v1356, 1
        %v1361 = vsel %vm1359, %v1360, %v1356
        %v1362 = vadd.s32 %v1357, %v1361
        %v1363 = vadd.s32 %v1362, 536870912
        %v1364 = vshrl.u32 %v1363, 30
        %v1365 = vshll.u32 %v1364, 30
        %v1366 = vsub.s32 %v1362, %v1365
        %vm1367 = vcmp.lt.s32.totalorder %v1366, 0
        %v1368 = vsub.s32 0, %v1366
        %v1369 = vsel %vm1367, %v1368, %v1366
        %v1370 = vclz %v1369
        %v1371 = vsub.s32 %v1370, 2
        %vm1372 = vcmp.gt.s32.totalorder 0, %v1371
        %v1373 = vsel %vm1372, 0, %v1371
        %v1374 = vsub.s32 32, %v1373
        %v1375 = vshll.u32 %v1366, %v1373
        %v1376 = vshrl.u32 %v1358, %v1374
        %v1377 = vor.u32 %v1375, %v1376
        %v1378 = vsub.s32 4294967266, %v1373
        %v1379 = vadd.s32 %v1378, 127
        %v1380 = vshll.u32 %v1379, 23
        %v1381 = vor.u32 4788187, %v1380
        %v1382 = vand.u32 2147483647, %v1381
        %v1384 = vcvt.s32.f32 %v1377
        %v1385 = vmul.f32 %v1384, %v1382
        %v1386 = vxor.u32 %v1385, 2147483648
        %v1387 = vsel %vm1304, %v1386, %v1385
        %v1388 = vsub.s32 4, %v1364
        %v1389 = vsel %vm1304, %v1388, %v1364
        %v1390 = vsel %vm1303, %v1088, %v1387
        %v1391 = vsel %vm1303, 0, %v1389
        %v1392 = vcosq.f32.pop %v1390
        %v1393 = vsinq.f32.pop %v1390
        %vm1394 = vweird.f32 %v1088
        %v1395 = vadd.s32 %v1391, 3
        %v1396 = vand.u32 %v1395, 3
        %vm1397 = vcmp.lt.s32.totalorder %v1396, 2
        %vm1398 = vcmp.eq.s32.totalorder %v1396, 0
        %v1399 = vxor.u32 %v1393, 2147483648
        %v1400 = vsel %vm1398, %v1392, %v1399
        %vm1401 = vcmp.eq.s32.totalorder %v1396, 2
        %v1402 = vxor.u32 %v1392, 2147483648
        %v1403 = vsel %vm1401, %v1402, %v1393
        %v1404 = vsel %vm1397, %v1400, %v1403
        %v1405 = vsel %vm1394, nan, %v1404
        %v1406 = vand.u32 2147483647, %v1093
        %vm1407 = vcmp.le.f32.partialorder %v1406, 0.7853982
        %vm1408 = vcmp.lt.s32.totalorder %v1093, 0
        %v1409 = vand.u32 %v1093, 2139095040
        %v1410 = vshrl.u32 %v1409, 23
        %v1411 = vsub.s32 %v1410, 127
        %v1412 = vand.u32 2147483647, %v1093
        %v1413 = vand.u32 %v1412, 8388607
        %v1414 = vor.u32 %v1413, 8388608
        %v1415 = vsub.s32 0, %v1414
        %v1416 = vadd.s32 %v1411, 1
        %vm1417 = vcmp.gt.s32.totalorder %v1416, 0
        %v1418 = vsel %vm1417, %v1416, 0
        %v1419 = vshrl.u32 %v1418, 5
        %v1420 = vand.u32 %v1418, 31
        %v1421 = vsub.s32 32, %v1420
        %v1422 = vshrl.u32 683565275, %v1421
        %v1423 = vshll.u32 683565275, %v1420
        %v1424 = vshrl.u32 2475754826, %v1421
        %v1425 = vor.u32 %v1423, %v1424
        %v1426 = vshll.u32 2475754826, %v1420
        %v1427 = vshrl.u32 2131351028, %v1421
        %v1428 = vor.u32 %v1426, %v1427
        %v1429 = vshll.u32 2131351028, %v1420
        %v1430 = vshrl.u32 2102212464, %v1421
        %v1431 = vor.u32 %v1429, %v1430
        %v1432 = vshll.u32 2102212464, %v1420
        %v1433 = vshrl.u32 920167782, %v1421
        %v1434 = vor.u32 %v1432, %v1433
        %v1435 = vshll.u32 920167782, %v1420
        %v1436 = vshrl.u32 1326507024, %v1421
        %v1437 = vor.u32 %v1435, %v1436
        %vm1438 = vcmp.lt.s32.totalorder %v1419, 1
        %vm1439 = vcmp.lt.s32.totalorder %v1419, 2
        %vm1440 = vcmp.lt.s32.totalorder %v1419, 3
        %vm1441 = vcmp.lt.s32.totalorder %v1419, 4
        %v1442 = vsel %vm1438, %v1422, %v1425
        %v1443 = vsel %vm1441, %v1431, 2102212464
        %v1444 = vsel %vm1440, %v1428, %v1443
        %v1445 = vsel %vm1439, %v1442, %v1444
        %v1446 = vsel %vm1438, %v1425, %v1428
        %v1447 = vsel %vm1441, %v1434, 920167782
        %v1448 = vsel %vm1440, %v1431, %v1447
        %v1449 = vsel %vm1439, %v1446, %v1448
        %v1450 = vsel %vm1438, %v1428, %v1431
        %v1451 = vsel %vm1441, %v1437, 1326507024
        %v1452 = vsel %vm1440, %v1434, %v1451
        %v1453 = vsel %vm1439, %v1450, %v1452
        %v1454 = vshll.u32 %v1414, 8
        %v1455 = vmul.u32.u64.compose %v1454, %v1453
        %v1456 = vextract.low.u32 %v1455
        %v1457 = vextract.high.u32 %v1455
        %v1458 = vmul.u32.u64.compose %v1454, %v1449
        %v1459 = vextract.low.u32 %v1458
        %v1460 = vextract.high.u32 %v1458
        %v1461 = vmul.u32 %v1454, %v1445
        %v1462 = vadd.s32 %v1457, %v1459
        %vm1463 = vc.u32 %v1457, %v1459
        %v1464 = vadd.s32 %v1460, 1
        %v1465 = vsel %vm1463, %v1464, %v1460
        %v1466 = vadd.s32 %v1461, %v1465
        %v1467 = vadd.s32 %v1466, 536870912
        %v1468 = vshrl.u32 %v1467, 30
        %v1469 = vshll.u32 %v1468, 30
        %v1470 = vsub.s32 %v1466, %v1469
        %vm1471 = vcmp.lt.s32.totalorder %v1470, 0
        %v1472 = vsub.s32 0, %v1470
        %v1473 = vsel %vm1471, %v1472, %v1470
        %v1474 = vclz %v1473
        %v1475 = vsub.s32 %v1474, 2
        %vm1476 = vcmp.gt.s32.totalorder 0, %v1475
        %v1477 = vsel %vm1476, 0, %v1475
        %v1478 = vsub.s32 32, %v1477
        %v1479 = vshll.u32 %v1470, %v1477
        %v1480 = vshrl.u32 %v1462, %v1478
        %v1481 = vor.u32 %v1479, %v1480
        %v1482 = vsub.s32 4294967266, %v1477
        %v1483 = vadd.s32 %v1482, 127
        %v1484 = vshll.u32 %v1483, 23
        %v1485 = vor.u32 4788187, %v1484
        %v1486 = vand.u32 2147483647, %v1485
        %v1488 = vcvt.s32.f32 %v1481
        %v1489 = vmul.f32 %v1488, %v1486
        %v1490 = vxor.u32 %v1489, 2147483648
        %v1491 = vsel %vm1408, %v1490, %v1489
        %v1492 = vsub.s32 4, %v1468
        %v1493 = vsel %vm1408, %v1492, %v1468
        %v1494 = vsel %vm1407, %v1093, %v1491
        %v1495 = vsel %vm1407, 0, %v1493
        %v1496 = vcosq.f32.pop %v1494
        %v1497 = vsinq.f32.pop %v1494
        %vm1498 = vweird.f32 %v1093
        %v1499 = vadd.s32 %v1495, 3
        %v1500 = vand.u32 %v1499, 3
        %vm1501 = vcmp.lt.s32.totalorder %v1500, 2
        %vm1502 = vcmp.eq.s32.totalorder %v1500, 0
        %v1503 = vxor.u32 %v1497, 2147483648
        %v1504 = vsel %vm1502, %v1496, %v1503
        %vm1505 = vcmp.eq.s32.totalorder %v1500, 2
        %v1506 = vxor.u32 %v1496, 2147483648
        %v1507 = vsel %vm1505, %v1506, %v1497
        %v1508 = vsel %vm1501, %v1504, %v1507
        %v1509 = vsel %vm1498, nan, %v1508
        %s1510 = scalar_lea.vmem [#allocation2], 128
        %v1511 = vld [vmem:[%s1510] sm:$0xff]
        %v1512 = vld [vmem:[%s1510 + $0x10] sm:$0xff]
        %1514 = vset.pattern.permute.xlu0 0
        %1515 = vperm.xlu0 %1514, %v1198
        %v1516 = vpop.permute.xlu0 %1515
        %1519 = vset.pattern.permute.xlu0 0
        %1520 = vperm.xlu0 %1519, %v1301
        %v1521 = vpop.permute.xlu0 %1520
        %v1523 = vlaneseq
        %v1524 = vshrl.u32 %v1523, 7
        %v1525 = vsub.s32 0, %v1524
        %v1526 = vrot.slane %v1511, %v1525
        %v1527 = vmul.f32 %v1516, %v1526
        %v1528 = vmul.f32 %v1521, %v1526
        %1530 = vset.pattern.permute.xlu0 0
        %1531 = vperm.xlu0 %1530, %v1405
        %v1532 = vpop.permute.xlu0 %1531
        %1535 = vset.pattern.permute.xlu0 0
        %1536 = vperm.xlu0 %1535, %v1509
        %v1537 = vpop.permute.xlu0 %1536
        %v1539 = vlaneseq
        %v1540 = vshrl.u32 %v1539, 7
        %v1541 = vsub.s32 0, %v1540
        %v1542 = vrot.slane %v1512, %v1541
        %v1543 = vmul.f32 %v1532, %v1542
        %v1544 = vmul.f32 %v1537, %v1542
        %v1545 = vadd.f32 %v1527, %v1543
        %v1546 = vadd.f32 %v1528, %v1544
        %v1547 = vmul.f32 %v1198, %v1545
        %v1548 = vmul.f32 %v1301, %v1546
        %s1549 = scalar_lea.vmem [#allocation2], 192
        %v1550 = vld [vmem:[%s1549] sm:$0xff]
        %v1551 = vld [vmem:[%s1549 + $0x8] sm:$0xff]
        %v1552 = vld [vmem:[%s1549 + $0x10] sm:$0xff]
        %v1553 = vld [vmem:[%s1549 + $0x18] sm:$0xff]
        %v1554 = vmul.f32 %v1405, %v1545
        %v1555 = vmul.f32 %v1509, %v1546
        %s1556 = scalar_lea.vmem [#allocation2], 224
        %v1557 = vld [vmem:[%s1556] sm:$0xff]
        %v1558 = vld [vmem:[%s1556 + $0x8] sm:$0xff]
        %v1559 = vld [vmem:[%s1556 + $0x10] sm:$0xff]
        %v1560 = vld [vmem:[%s1556 + $0x18] sm:$0xff]
        %v1562 = vsel %vm846, %v1554, 0
        %v1565 = vsel %vm846, %v1555, 0
        %1567 = vmatprep.subr.mxu0 0.0
        %1568 = vmatpush1.msra.mxu0 %v1557
        %1569 = vmatprep.subr.mxu0 0.0
        %1570 = vmatpush1.msra.mxu0 %v1558
        %1571 = vmatprep.subr.mxu0 0.0
        %1572 = vmatpush1.msra.mxu0 %v1559
        %1573 = vmatprep.subr.mxu0 0.0
        %1574 = vmatpush1.msra.mxu0 %v1560
        %1575 = vmatprep.subr.mxu0 0.0
        %1576 = vmatpush1.msra.mxu0 0.0
        %1577 = vmatprep.subr.mxu0 0.0
        %1578 = vmatpush1.msra.mxu0 0.0
        %1579 = vmatprep.subr.mxu0 0.0
        %1580 = vmatpush1.msra.mxu0 0.0
        %1581 = vmatprep.subr.mxu0 0.0
        %1582 = vmatpush1.msra.mxu0 0.0
        %1583 = vmatprep.subr.mxu0 0.0
        %1584 = vmatpush1.msra.mxu0 0.0
        %1585 = vmatprep.subr.mxu0 0.0
        %1586 = vmatpush1.msra.mxu0 0.0
        %1587 = vmatprep.subr.mxu0 0.0
        %1588 = vmatpush1.msra.mxu0 0.0
        %1589 = vmatprep.subr.mxu0 0.0
        %1590 = vmatpush1.msra.mxu0 0.0
        %1591 = vmatprep.subr.mxu0 0.0
        %1592 = vmatpush1.msra.mxu0 0.0
        %1593 = vmatprep.subr.mxu0 0.0
        %1594 = vmatpush1.msra.mxu0 0.0
        %1595 = vmatprep.subr.mxu0 0.0
        %1596 = vmatpush1.msra.mxu0 0.0
        %1597 = vmatprep.subr.mxu0 0.0
        %1598 = vmatpush1.msra.mxu0 0.0
        %1599 = vmatprep.subr.mxu0 0.0
        %1600 = vmatpush1.msra.mxu0 0.0
        %1601 = vmatprep.subr.mxu0 0.0
        %1602 = vmatpush1.msra.mxu0 0.0
        %1603 = vmatprep.subr.mxu0 0.0
        %1604 = vmatpush1.msra.mxu0 0.0
        %1605 = vmatprep.subr.mxu0 0.0
        %1606 = vmatpush1.msra.mxu0 0.0
        %1607 = vmatprep.subr.mxu0 0.0
        %1608 = vmatpush1.msra.mxu0 0.0
        %1609 = vmatprep.subr.mxu0 0.0
        %1610 = vmatpush1.msra.mxu0 0.0
        %1611 = vmatprep.subr.mxu0 0.0
        %1612 = vmatpush1.msra.mxu0 0.0
        %1613 = vmatprep.subr.mxu0 0.0
        %1614 = vmatpush1.msra.mxu0 0.0
        %1615 = vmatprep.subr.mxu0 0.0
        %1616 = vmatpush1.msra.mxu0 0.0
        %1617 = vmatprep.subr.mxu0 0.0
        %1618 = vmatpush1.msra.mxu0 0.0
        %1619 = vmatprep.subr.mxu0 0.0
        %1620 = vmatpush1.msra.mxu0 0.0
        %1621 = vmatprep.subr.mxu0 0.0
        %1622 = vmatpush1.msra.mxu0 0.0
        %1623 = vmatprep.subr.mxu0 0.0
        %1624 = vmatpush1.msra.mxu0 0.0
        %1625 = vmatprep.subr.mxu0 0.0
        %1626 = vmatpush1.msra.mxu0 0.0
        %1627 = vmatprep.subr.mxu0 0.0
        %1628 = vmatpush1.msra.mxu0 0.0
        %1629 = vmatprep.subr.mxu0 0.0
        %1630 = vmatpush1.msra.mxu0 0.0
        %1631 = vmatprep.mubr.f32.mxu0 0.0
        %1632 = vmatmul.mubr.f32.gmra.mrb[0].mxu0 %v1562
        %v1633 = vpop.f32.mrb[0].mxu0
        %v1634 = vadd.f32 0.0, %v1633
        %v1635 = vpop.f32.mrb[0].mxu0
        %1636 = vmatprep.mubr.f32.mxu0 0.0
        %1637 = vmatmul.mubr.f32.gmra.mrb[0].mxu0 %v1565
        %v1638 = vpop.f32.mrb[0].mxu0
        %v1639 = vadd.f32 0.0, %v1638
        %v1640 = vpop.f32.mrb[0].mxu0
        %1641 = vdwg.mxu0
        %v1643 = vsel %vm846, %v1547, 0
        %v1646 = vsel %vm846, %v1548, 0
        %1648 = vmatprep.subr.mxu0 0.0
        %1649 = vmatpush1.msra.mxu0 %v1550
        %1650 = vmatprep.subr.mxu0 0.0
        %1651 = vmatpush1.msra.mxu0 %v1551
        %1652 = vmatprep.subr.mxu0 0.0
        %1653 = vmatpush1.msra.mxu0 %v1552
        %1654 = vmatprep.subr.mxu0 0.0
        %1655 = vmatpush1.msra.mxu0 %v1553
        %1656 = vmatprep.subr.mxu0 0.0
        %1657 = vmatpush1.msra.mxu0 0.0
        %1658 = vmatprep.subr.mxu0 0.0
        %1659 = vmatpush1.msra.mxu0 0.0
        %1660 = vmatprep.subr.mxu0 0.0
        %1661 = vmatpush1.msra.mxu0 0.0
        %1662 = vmatprep.subr.mxu0 0.0
        %1663 = vmatpush1.msra.mxu0 0.0
        %1664 = vmatprep.subr.mxu0 0.0
        %1665 = vmatpush1.msra.mxu0 0.0
        %1666 = vmatprep.subr.mxu0 0.0
        %1667 = vmatpush1.msra.mxu0 0.0
        %1668 = vmatprep.subr.mxu0 0.0
        %1669 = vmatpush1.msra.mxu0 0.0
        %1670 = vmatprep.subr.mxu0 0.0
        %1671 = vmatpush1.msra.mxu0 0.0
        %1672 = vmatprep.subr.mxu0 0.0
        %1673 = vmatpush1.msra.mxu0 0.0
        %1674 = vmatprep.subr.mxu0 0.0
        %1675 = vmatpush1.msra.mxu0 0.0
        %1676 = vmatprep.subr.mxu0 0.0
        %1677 = vmatpush1.msra.mxu0 0.0
        %1678 = vmatprep.subr.mxu0 0.0
        %1679 = vmatpush1.msra.mxu0 0.0
        %1680 = vmatprep.subr.mxu0 0.0
        %1681 = vmatpush1.msra.mxu0 0.0
        %1682 = vmatprep.subr.mxu0 0.0
        %1683 = vmatpush1.msra.mxu0 0.0
        %1684 = vmatprep.subr.mxu0 0.0
        %1685 = vmatpush1.msra.mxu0 0.0
        %1686 = vmatprep.subr.mxu0 0.0
        %1687 = vmatpush1.msra.mxu0 0.0
        %1688 = vmatprep.subr.mxu0 0.0
        %1689 = vmatpush1.msra.mxu0 0.0
        %1690 = vmatprep.subr.mxu0 0.0
        %1691 = vmatpush1.msra.mxu0 0.0
        %1692 = vmatprep.subr.mxu0 0.0
        %1693 = vmatpush1.msra.mxu0 0.0
        %1694 = vmatprep.subr.mxu0 0.0
        %1695 = vmatpush1.msra.mxu0 0.0
        %1696 = vmatprep.subr.mxu0 0.0
        %1697 = vmatpush1.msra.mxu0 0.0
        %1698 = vmatprep.subr.mxu0 0.0
        %1699 = vmatpush1.msra.mxu0 0.0
        %1700 = vmatprep.subr.mxu0 0.0
        %1701 = vmatpush1.msra.mxu0 0.0
        %1702 = vmatprep.subr.mxu0 0.0
        %1703 = vmatpush1.msra.mxu0 0.0
        %1704 = vmatprep.subr.mxu0 0.0
        %1705 = vmatpush1.msra.mxu0 0.0
        %1706 = vmatprep.subr.mxu0 0.0
        %1707 = vmatpush1.msra.mxu0 0.0
        %1708 = vmatprep.subr.mxu0 0.0
        %1709 = vmatpush1.msra.mxu0 0.0
        %1710 = vmatprep.subr.mxu0 0.0
        %1711 = vmatpush1.msra.mxu0 0.0
        %1712 = vmatprep.mubr.f32.mxu0 0.0
        %1713 = vmatmul.mubr.f32.gmra.mrb[0].mxu0 %v1643
        %v1714 = vpop.f32.mrb[0].mxu0
        %v1715 = vadd.f32 %v1634, %v1714
        %v1716 = vpop.f32.mrb[0].mxu0
        %1717 = vmatprep.mubr.f32.mxu0 0.0
        %1718 = vmatmul.mubr.f32.gmra.mrb[0].mxu0 %v1646
        %v1719 = vpop.f32.mrb[0].mxu0
        %v1720 = vadd.f32 %v1639, %v1719
        %v1721 = vpop.f32.mrb[0].mxu0
        %1722 = vdwg.mxu0
        %v1723 = vmul.f32 %v1715, %v1715
        %v1724 = vmul.f32 %v1720, %v1720
        %v1725 = vld [vmem:[%s4] sm:$0xf]
        %v1726 = vld [vmem:[%s4 + $0x4] sm:$0xf]
        %v1727 = vld [vmem:[%s4 + $0x8] sm:$0xf]
        %v1728 = vld [vmem:[%s4 + $0xc] sm:$0xf]
        %v1729 = vld [vmem:[%s5] sm:$0x1]
        %v1731 = vlaneseq
        %v1732 = vshrl.u32 %v1731, 7
        %v1733 = vsub.s32 0, %v1732
        %v1734 = vrot.slane %v1729, %v1733
        %v1740 = vunpack.c.l.b16 %v1725
        %v1741 = vunpack.c.l.b16 %v1726
        %v1742 = vunpack.c.l.b16 %v1727
        %v1743 = vunpack.c.l.b16 %v1728
        %v1744 = vpack.c.b16 %v1741, %v1740
        %v1745 = vpack.c.b16 %v1743, %v1742
        %v1749 = vsel %vm846, %v1723, 0
        %v1752 = vsel %vm846, %v1724, 0
        %1754 = vmatprep.subr.bf16.mxu0 0
        %1755 = vmatpush1.bf16.msra.mxu0 %v1744
        %1756 = vmatprep.subr.bf16.mxu0 0
        %1757 = vmatpush1.bf16.msra.mxu0 %v1745
        %1758 = vmatprep.subr.bf16.mxu0 0
        %1759 = vmatpush1.bf16.msra.mxu0 0
        %1760 = vmatprep.subr.bf16.mxu0 0
        %1761 = vmatpush1.bf16.msra.mxu0 0
        %1762 = vmatprep.subr.bf16.mxu0 0
        %1763 = vmatpush1.bf16.msra.mxu0 0
        %1764 = vmatprep.subr.bf16.mxu0 0
        %1765 = vmatpush1.bf16.msra.mxu0 0
        %1766 = vmatprep.subr.bf16.mxu0 0
        %1767 = vmatpush1.bf16.msra.mxu0 0
        %1768 = vmatprep.subr.bf16.mxu0 0
        %1769 = vmatpush1.bf16.msra.mxu0 0
        %1770 = vmatprep.subr.bf16.mxu0 0
        %1771 = vmatpush1.bf16.msra.mxu0 0
        %1772 = vmatprep.subr.bf16.mxu0 0
        %1773 = vmatpush1.bf16.msra.mxu0 0
        %1774 = vmatprep.subr.bf16.mxu0 0
        %1775 = vmatpush1.bf16.msra.mxu0 0
        %1776 = vmatprep.subr.bf16.mxu0 0
        %1777 = vmatpush1.bf16.msra.mxu0 0
        %1778 = vmatprep.subr.bf16.mxu0 0
        %1779 = vmatpush1.bf16.msra.mxu0 0
        %1780 = vmatprep.subr.bf16.mxu0 0
        %1781 = vmatpush1.bf16.msra.mxu0 0
        %1782 = vmatprep.subr.bf16.mxu0 0
        %1783 = vmatpush1.bf16.msra.mxu0 0
        %1784 = vmatprep.subr.bf16.mxu0 0
        %1785 = vmatpush1.bf16.msra.mxu0 0
        %1786 = vmatprep.mubr.f32.mxu0 0.0
        %1787 = vmatmul.mubr.f32.gmra.mrb[0].mxu0 %v1749
        %v1788 = vpop.f32.mrb[0].mxu0
        %v1789 = vadd.f32 %v1734, %v1788
        %v1790 = vpop.f32.mrb[0].mxu0
        %1791 = vmatprep.mubr.f32.mxu0 0.0
        %1792 = vmatmul.mubr.f32.gmra.mrb[0].mxu0 %v1752
        %v1793 = vpop.f32.mrb[0].mxu0
        %v1794 = vadd.f32 %v1734, %v1793
        %v1795 = vpop.f32.mrb[0].mxu0
        %1796 = vdwg.mxu0
        %v1797 = vpack.c.bf16 %v1794, %v1789
        %v1799 = vunpack.c.l.b16 %v1797
        %v1800 = vunpack.c.h.b16 %v1797
        %v1801 = vpack.c.b16 %v1799, %v1799
        %v1802 = vpack.c.b16 %v1800, %v1800
        %1805 = vst [vmem:[%s260] sm:$0xf] %v1801
        %1806 = vst [vmem:[%s260 + $0x4] sm:$0xf] %v1802
        %s1807 = sand.u32 %s160, 1
        %s1808 = scalar_lea.sflag [#allocation4], %s1807
        %s1809 = sand.u32 %s160, 1
        %s1810 = smul.addr %s1809, 8
        %s1811 = scalar_lea.vmem [#allocation5], %s1810
        // Predicated region
        $region49: #{tpu_custom_call.1} parent=43 // pred_check
          %p1812 = pneg %p170
        $region50: #{tpu_custom_call.1} parent=43 // pred_check_branch
          %1814 = sbr.rel (%p1812) target = $region52
        $region51: #{tpu_custom_call.1} parent=43 // pred_region
          %s1815 = smul.u32 2, %s21
          %s1817 = ssub.s32 128, 128
          %1818 = vsyncadd %s1808, %s1817
          %s1819 = smul.addr %s1815, 64
          %s1820 = scalar_lea.hbm %s6, %s1819
          %s1821 = sshll.u32 %s1811, 4
          %s1822 = int_to_ptr.vmem [resolvable:$true] %s1821
          %1827 = dma.vmem_to_hbm [thread:$0]  %s1822, 128, %s1820, %s1808, 64, 64, 4
        $region52: #{tpu_custom_call.1} parent=43 // pred_fallthru
          _
      $region44: #{tpu_custom_call.1} parent=5 // pred_fallthru
        _
      %p1828 = scmp.le.s32.totalorder 2, %s16
      // Predicated region
      $region53: #{tpu_custom_call.1} parent=5 // pred_check
        %p1829 = pneg %p1828
      $region54: #{tpu_custom_call.1} parent=5 // pred_check_branch
        %1831 = sbr.rel (%p1829) target = $region56
      $region55: #{tpu_custom_call.1} parent=5 // pred_region
        %s1832 = ssub.s32 %s16, 2
        // Predicated region
        $region57: #{tpu_custom_call.1} parent=55 // pred_check
          %p1833 = pneg %p176
        $region58: #{tpu_custom_call.1} parent=55 // pred_check_branch
          %1835 = sbr.rel (%p1833) target = $region60
        $region59: #{tpu_custom_call.1} parent=55 // pred_region
          %s1836 = sand.u32 %s161, 1
          %s1837 = scalar_lea.sflag [#allocation4], %s1836
          %s1838 = sand.u32 %s161, 1
          %s1839 = smul.addr %s1838, 8
          %s1840 = scalar_lea.vmem [#allocation5], %s1839
          %1841 = dma.done %s1837, 128
        $region60: #{tpu_custom_call.1} parent=55 // pred_fallthru
          _
      $region56: #{tpu_custom_call.1} parent=5 // pred_fallthru
        _
    $region6: #{tpu_custom_call.1} parent=1 // loop_footer
      %s20 = sadd.s32 1, %s16
    $region7: #{tpu_custom_call.1} parent=1 // loop_footer_branch
      %15 = sbr.rel target = $region3
    $region8: #{tpu_custom_call.1} parent=1 // loop_exit
      _
    %1842 = vsyncpa [#allocation3], 1
    %s1843 = scalar_lea.sflag [#allocation3], 1
    %1844 = vsyncpa %s1843, 1
    %1845 = vsyncpa [#allocation4], 1
    %s1846 = scalar_lea.sflag [#allocation4], 1
    %1847 = vsyncpa %s1846, 1

</llo_original>
